<compile_context>
chip_gen: v7x
topology: tpu7x:2x2x1
jax: 0.10.0
libtpu: 0.0.40
codegen_flags: <defaults>
</compile_context>

<pallas_src>
import jax
import jax.numpy as jnp
from jax.experimental import pallas as pl
from jax.experimental.pallas import tpu as pltpu

NUM_REL = 5          # number of relations (5 in the original module)
LANE    = 128        # TPU lane width
NUM_CLS = 2

# scaled-down dimensions (original values in comments)
F_IN   = 128         # 1613
DIM1   = 128         # 1340
DIM2   = 64          # 920
DIM3   = 32          # 740
DIM2_P = LANE        # lane-padded dim2 used inside the kernel
DIM3_P = LANE        # lane-padded dim3 used inside the kernel
N_IN   = 8           # number of "drug" input nodes (x rows)
N_GENE = 24          # 4264 gene-embedding rows
N_NODE = N_IN + N_GENE   # 32 — multiple of 16 (bf16 sublane pack)
N_EDGE = 64


# ----------------------------------------------------------------------------
# Fused Pallas kernel: conv1+relu -> conv2+relu -> lin1+relu -> lin2 -> logsoftmax
# ----------------------------------------------------------------------------
def _fused_net_kernel(x_ref, a_ref,
                      w1rel_ref, w1root_ref, b1_ref,
                      w2rel_ref, w2root_ref, b2_ref,
                      l1w_ref, l1b_ref, l2w_ref, l2b_ref,
                      logp_ref, emb_ref):
    f32, bf16 = jnp.float32, jnp.bfloat16

    def rgcn_relu(h_bf, wrel_wide, wroot, bias):
        # "Weights first" reorder + one wide (Fin, R*Fout) MXU matmul instead of
        # R small ones; aggregation A[r] @ y_r is a static R=5 unroll.
        y = jnp.dot(h_bf, wrel_wide, preferred_element_type=f32)       # (N, R*128)
        acc = jnp.dot(h_bf, wroot, preferred_element_type=f32) + bias  # (N, 128)
        y_bf = y.astype(bf16)
        for r in range(NUM_REL):                                       # static unroll
            acc = acc + jnp.dot(a_ref[r], y_bf[:, r * LANE:(r + 1) * LANE],
                                preferred_element_type=f32)
        return jnp.maximum(acc, 0.0)

    x = x_ref[...]                                                     # (N, F_IN) bf16
    h1 = rgcn_relu(x, w1rel_ref[...], w1root_ref[...], b1_ref[...]).astype(bf16)
    # TODO(synk): F.dropout(p=0.645, training=True) has no deterministic
    # equivalent; forward is implemented in eval mode (dropout = identity).
    h2 = rgcn_relu(h1, w2rel_ref[...], w2root_ref[...], b2_ref[...]).astype(bf16)

    # lin1 + relu  (lane-padded to 128 output columns; pad columns are exactly 0)
    emb = jnp.maximum(
        jnp.dot(h2, l1w_ref[...], preferred_element_type=f32) + l1b_ref[...], 0.0)
    emb_ref[...] = emb.astype(emb_ref.dtype)                           # lane-dense (N,128)

    # lin2 padded to a 128-wide matmul, then masked log_softmax over the 2 real classes
    logits = jnp.dot(emb.astype(bf16), l2w_ref[...],
                     preferred_element_type=f32) + l2b_ref[...]        # (N, 128)
    col = jax.lax.broadcasted_iota(jnp.int32, logits.shape, 1)
    logits = jnp.where(col < NUM_CLS, logits, -1e30)
    m = jnp.max(logits, axis=-1, keepdims=True)
    s = logits - m
    lse = jnp.log(jnp.sum(jnp.exp(s), axis=-1, keepdims=True))
    logp_ref[...] = (s - lse).astype(logp_ref.dtype)                   # lane-dense (N,128)


def _vmem_specs(n):
    return [pl.BlockSpec(memory_space=pltpu.MemorySpace.VMEM) for _ in range(n)]


# ----------------------------------------------------------------------------
# Plain-JAX glue (layout plumbing: bf16 cast, lane padding, relation-weight concat)
# ----------------------------------------------------------------------------
def build_adjacency(edge_index, edge_type, num_nodes, num_rel):
    """Dense per-relation adjacency with PyG RGCNConv 'mean' normalization:
       A[r, i, j] = 1/|N_r(i)| for each edge j -> i of type r."""
    src = edge_index[0]
    dst = edge_index[1]
    a = jnp.zeros((num_rel, num_nodes, num_nodes), jnp.float32)
    a = a.at[edge_type, dst, src].add(1.0)
    deg = jnp.sum(a, axis=-1, keepdims=True)
    return a / jnp.maximum(deg, 1.0)


def _prep_rgcn(w_rel, w_root, bias, fout_pad):
    """Pad Fout to a lane multiple and concat per-relation weights into one
    (Fin, R*Fout_pad) matrix; cast matmul operands to bf16."""
    r, fin, fout = w_rel.shape
    w_rel = jnp.pad(w_rel, ((0, 0), (0, 0), (0, fout_pad - fout)))
    w_root = jnp.pad(w_root, ((0, 0), (0, fout_pad - fout)))
    bias = jnp.pad(bias, ((0, 0), (0, fout_pad - fout)))
    w_rel_wide = jnp.transpose(w_rel, (1, 0, 2)).reshape(fin, r * fout_pad)
    return (w_rel_wide.astype(jnp.bfloat16),
            w_root.astype(jnp.bfloat16),
            bias.astype(jnp.float32))


@jax.jit
def net_forward(params, x, edge_index, edge_type):
    # x = torch.cat((x, gene_emb), dim=0)
    xcat = jnp.concatenate([x, params["gene_emb"]], axis=0)
    n = xcat.shape[0]
    A = build_adjacency(edge_index, edge_type, n, NUM_REL)

    w1rel, w1root, b1 = _prep_rgcn(params["conv1_w_rel"], params["conv1_w_root"],
                                   params["conv1_b"], DIM1)
    w2rel, w2root, b2 = _prep_rgcn(params["conv2_w_rel"], params["conv2_w_root"],
                                   params["conv2_b"], DIM2_P)
    l1w = jnp.pad(params["lin1_w"],
                  ((0, DIM2_P - DIM2), (0, DIM3_P - DIM3))).astype(jnp.bfloat16)
    l1b = jnp.pad(params["lin1_b"], ((0, 0), (0, DIM3_P - DIM3))).astype(jnp.float32)
    l2w = jnp.pad(params["lin2_w"],
                  ((0, DIM3_P - DIM3), (0, LANE - NUM_CLS))).astype(jnp.bfloat16)
    l2b = jnp.pad(params["lin2_b"], ((0, 0), (0, LANE - NUM_CLS))).astype(jnp.float32)

    logp_pad, emb_pad = pl.pallas_call(
        _fused_net_kernel,
        out_shape=(jax.ShapeDtypeStruct((n, LANE), jnp.float32),
                   jax.ShapeDtypeStruct((n, LANE), jnp.float32)),
        in_specs=_vmem_specs(12),
        out_specs=(pl.BlockSpec(memory_space=pltpu.MemorySpace.VMEM),
                   pl.BlockSpec(memory_space=pltpu.MemorySpace.VMEM)),
    )(xcat.astype(jnp.bfloat16), A.astype(jnp.bfloat16),
      w1rel, w1root, b1, w2rel, w2root, b2, l1w, l1b, l2w, l2b)

    # slice the lane-padded slabs back to the module's output shapes
    return logp_pad[:, :NUM_CLS], emb_pad[:, :DIM3]


def ref_forward(params, x, edge_index, edge_type):
    """Pure-JAX reference mirroring the kernel's bf16-input / f32-accumulate policy."""
    bf = lambda t: t.astype(jnp.bfloat16).astype(jnp.float32)
    hp = jax.lax.Precision.HIGHEST
    xcat = bf(jnp.concatenate([x, params["gene_emb"]], axis=0))
    A = bf(build_adjacency(edge_index, edge_type, xcat.shape[0], NUM_REL))

    def rgcn(h, wrel, wroot, b):
        y = bf(jnp.einsum("nf,rfo->rno", h, bf(wrel), precision=hp))
        agg = jnp.einsum("rij,rjo->io", A, y, precision=hp)
        out = jnp.dot(h, bf(wroot), precision=hp) + agg + b
        return jnp.maximum(out, 0.0)

    h1 = bf(rgcn(xcat, params["conv1_w_rel"], params["conv1_w_root"], params["conv1_b"]))
    h2 = bf(rgcn(h1, params["conv2_w_rel"], params["conv2_w_root"], params["conv2_b"]))
    emb = jnp.maximum(jnp.dot(h2, bf(params["lin1_w"]), precision=hp)
                      + params["lin1_b"], 0.0)
    logits = jnp.dot(bf(emb), bf(params["lin2_w"]), precision=hp) + params["lin2_b"]
    return jax.nn.log_softmax(logits, axis=-1), emb


def init_params(key):
    ks = jax.random.split(key, 12)
    scale = 0.1
    p = {
        "gene_emb":     jax.random.normal(ks[0], (N_GENE, F_IN), jnp.float32),
        # RGCNConv(1613 -> dim1, 5 relations): per-relation weights + root + bias
        "conv1_w_rel":  scale * jax.random.normal(ks[1], (NUM_REL, F_IN, DIM1), jnp.float32),
        "conv1_w_root": scale * jax.random.normal(ks[2], (F_IN, DIM1), jnp.float32),
        "conv1_b":      scale * jax.random.normal(ks[3], (1, DIM1), jnp.float32),
        # RGCNConv(dim1 -> dim2, 5 relations)
        "conv2_w_rel":  scale * jax.random.normal(ks[4], (NUM_REL, DIM1, DIM2), jnp.float32),
        "conv2_w_root": scale * jax.random.normal(ks[5], (DIM1, DIM2), jnp.float32),
        "conv2_b":      scale * jax.random.normal(ks[6], (1, DIM2), jnp.float32),
        # Linear(dim2 -> dim3) — stored as (in, out) = W^T
        "lin1_w":       scale * jax.random.normal(ks[7], (DIM2, DIM3), jnp.float32),
        "lin1_b":       scale * jax.random.normal(ks[8], (1, DIM3), jnp.float32),
        # Linear(dim3 -> 2)
        "lin2_w":       scale * jax.random.normal(ks[9], (DIM3, 2), jnp.float32),
        "lin2_b":       scale * jax.random.normal(ks[10], (1, 2), jnp.float32),
    }
    return p, ks[11]


if __name__ == "__main__":
    key = jax.random.PRNGKey(0)
    params, key = init_params(key)

    k_x, k_src, k_dst, k_type = jax.random.split(key, 4)
    x = jax.random.normal(k_x, (N_IN, F_IN), jnp.float32)
    edge_index = jnp.stack([
        jax.random.randint(k_src, (N_EDGE,), 0, N_NODE),
        jax.random.randint(k_dst, (N_EDGE,), 0, N_NODE),
    ], axis=0).astype(jnp.int32)
    edge_type = jax.random.randint(k_type, (N_EDGE,), 0, NUM_REL).astype(jnp.int32)

    logp, emb = net_forward(params, x, edge_index, edge_type)
    jax.block_until_ready((logp, emb))

    # correctness check against a pure-JAX reference with the same bf16 policy
    logp_ref, emb_ref = ref_forward(params, x, edge_index, edge_type)
    assert logp.shape == (N_NODE, NUM_CLS) and emb.shape == (N_NODE, DIM3)
    assert jnp.allclose(logp, logp_ref, atol=2e-2, rtol=2e-2)
    assert jnp.allclose(emb, emb_ref, atol=2e-2, rtol=2e-2)

    print("KERNEL_OK")
</pallas_src>

<mosaic_0001>
module attributes {stable_mosaic.version = 11 : i64} {
  func.func private @main(%arg0: i32) attributes {dimension_semantics = [#tpu.dimension_semantics<core_parallel>], iteration_bounds = array<i64: 2>, tpu.core_type = #tpu.core_type<sc_scalar_subcore>, window_params = []} {
    return
  }
}

module attributes {stable_mosaic.version = 11 : i64} {
  func.func private @main(%arg0: i32) attributes {dimension_semantics = [#tpu.dimension_semantics<core_parallel>], iteration_bounds = array<i64: 2>, tpu.core_type = #tpu.core_type<sc_scalar_subcore>, window_params = []} {
    return
  }
}

module attributes {stable_mosaic.version = 11 : i64} {
  func.func @_fused_net_kernel(%arg0: memref<32x128xbf16, #tpu.memory_space<vmem>>, %arg1: memref<5x32x32xbf16, #tpu.memory_space<vmem>>, %arg2: memref<128x640xbf16, #tpu.memory_space<vmem>>, %arg3: memref<128x128xbf16, #tpu.memory_space<vmem>>, %arg4: memref<1x128xf32, #tpu.memory_space<vmem>>, %arg5: memref<128x640xbf16, #tpu.memory_space<vmem>>, %arg6: memref<128x128xbf16, #tpu.memory_space<vmem>>, %arg7: memref<1x128xf32, #tpu.memory_space<vmem>>, %arg8: memref<128x128xbf16, #tpu.memory_space<vmem>>, %arg9: memref<1x128xf32, #tpu.memory_space<vmem>>, %arg10: memref<128x128xbf16, #tpu.memory_space<vmem>>, %arg11: memref<1x128xf32, #tpu.memory_space<vmem>>, %arg12: memref<32x128xf32, #tpu.memory_space<vmem>>, %arg13: memref<32x128xf32, #tpu.memory_space<vmem>>) attributes {dimension_semantics = [], scalar_prefetch = 0 : i64, scratch_operands = 0 : i64, tpu.core_type = #tpu.core_type<tc>} {
    %c0 = arith.constant 0 : index
    %c0_0 = arith.constant 0 : index
    %0 = vector.load %arg0[%c0, %c0_0] : memref<32x128xbf16, #tpu.memory_space<vmem>>, vector<32x128xbf16>
    %c0_1 = arith.constant 0 : index
    %c0_2 = arith.constant 0 : index
    %1 = vector.load %arg2[%c0_1, %c0_2] : memref<128x640xbf16, #tpu.memory_space<vmem>>, vector<128x640xbf16>
    %c0_3 = arith.constant 0 : index
    %c0_4 = arith.constant 0 : index
    %2 = vector.load %arg3[%c0_3, %c0_4] : memref<128x128xbf16, #tpu.memory_space<vmem>>, vector<128x128xbf16>
    %c0_5 = arith.constant 0 : index
    %c0_6 = arith.constant 0 : index
    %3 = vector.load %arg4[%c0_5, %c0_6] : memref<1x128xf32, #tpu.memory_space<vmem>>, vector<1x128xf32>
    %cst = arith.constant dense<0.000000e+00> : vector<32x640xf32>
    %4 = tpu.matmul %0, %1, %cst {dimension_numbers = #tpu.dot_dimension_numbers<[1], [0], [0], [1], [0, 0, 1, 1], [], []>} : vector<32x128xbf16>, vector<128x640xbf16>, vector<32x640xf32> -> vector<32x640xf32>
    %cst_7 = arith.constant dense<0.000000e+00> : vector<32x128xf32>
    %5 = tpu.matmul %0, %2, %cst_7 {dimension_numbers = #tpu.dot_dimension_numbers<[1], [0], [0], [1], [0, 0, 1, 1], [], []>} : vector<32x128xbf16>, vector<128x128xbf16>, vector<32x128xf32> -> vector<32x128xf32>
    %6 = vector.broadcast %3 : vector<1x128xf32> to vector<32x128xf32>
    %7 = arith.addf %5, %6 : vector<32x128xf32>
    %8 = arith.truncf %4 : vector<32x640xf32> to vector<32x640xbf16>
    %c0_8 = arith.constant 0 : index
    %c0_9 = arith.constant 0 : index
    %c0_10 = arith.constant 0 : index
    %9 = vector.load %arg1[%c0_8, %c0_9, %c0_10] : memref<5x32x32xbf16, #tpu.memory_space<vmem>>, vector<1x32x32xbf16>
    %10 = vector.shape_cast %9 : vector<1x32x32xbf16> to vector<32x32xbf16>
    %11 = vector.extract_strided_slice %8 {offsets = [0, 0], sizes = [32, 128], strides = [1, 1]} : vector<32x640xbf16> to vector<32x128xbf16>
    %cst_11 = arith.constant dense<0.000000e+00> : vector<32x128xf32>
    %12 = tpu.matmul %10, %11, %cst_11 {dimension_numbers = #tpu.dot_dimension_numbers<[1], [0], [0], [1], [0, 0, 1, 1], [], []>} : vector<32x32xbf16>, vector<32x128xbf16>, vector<32x128xf32> -> vector<32x128xf32>
    %13 = arith.addf %7, %12 : vector<32x128xf32>
    %c1 = arith.constant 1 : index
    %c0_12 = arith.constant 0 : index
    %c0_13 = arith.constant 0 : index
    %14 = vector.load %arg1[%c1, %c0_12, %c0_13] : memref<5x32x32xbf16, #tpu.memory_space<vmem>>, vector<1x32x32xbf16>
    %15 = vector.shape_cast %14 : vector<1x32x32xbf16> to vector<32x32xbf16>
    %16 = vector.extract_strided_slice %8 {offsets = [0, 128], sizes = [32, 128], strides = [1, 1]} : vector<32x640xbf16> to vector<32x128xbf16>
    %cst_14 = arith.constant dense<0.000000e+00> : vector<32x128xf32>
    %17 = tpu.matmul %15, %16, %cst_14 {dimension_numbers = #tpu.dot_dimension_numbers<[1], [0], [0], [1], [0, 0, 1, 1], [], []>} : vector<32x32xbf16>, vector<32x128xbf16>, vector<32x128xf32> -> vector<32x128xf32>
    %18 = arith.addf %13, %17 : vector<32x128xf32>
    %c2 = arith.constant 2 : index
    %c0_15 = arith.constant 0 : index
    %c0_16 = arith.constant 0 : index
    %19 = vector.load %arg1[%c2, %c0_15, %c0_16] : memref<5x32x32xbf16, #tpu.memory_space<vmem>>, vector<1x32x32xbf16>
    %20 = vector.shape_cast %19 : vector<1x32x32xbf16> to vector<32x32xbf16>
    %21 = vector.extract_strided_slice %8 {offsets = [0, 256], sizes = [32, 128], strides = [1, 1]} : vector<32x640xbf16> to vector<32x128xbf16>
    %cst_17 = arith.constant dense<0.000000e+00> : vector<32x128xf32>
    %22 = tpu.matmul %20, %21, %cst_17 {dimension_numbers = #tpu.dot_dimension_numbers<[1], [0], [0], [1], [0, 0, 1, 1], [], []>} : vector<32x32xbf16>, vector<32x128xbf16>, vector<32x128xf32> -> vector<32x128xf32>
    %23 = arith.addf %18, %22 : vector<32x128xf32>
    %c3 = arith.constant 3 : index
    %c0_18 = arith.constant 0 : index
    %c0_19 = arith.constant 0 : index
    %24 = vector.load %arg1[%c3, %c0_18, %c0_19] : memref<5x32x32xbf16, #tpu.memory_space<vmem>>, vector<1x32x32xbf16>
    %25 = vector.shape_cast %24 : vector<1x32x32xbf16> to vector<32x32xbf16>
    %26 = vector.extract_strided_slice %8 {offsets = [0, 384], sizes = [32, 128], strides = [1, 1]} : vector<32x640xbf16> to vector<32x128xbf16>
    %cst_20 = arith.constant dense<0.000000e+00> : vector<32x128xf32>
    %27 = tpu.matmul %25, %26, %cst_20 {dimension_numbers = #tpu.dot_dimension_numbers<[1], [0], [0], [1], [0, 0, 1, 1], [], []>} : vector<32x32xbf16>, vector<32x128xbf16>, vector<32x128xf32> -> vector<32x128xf32>
    %28 = arith.addf %23, %27 : vector<32x128xf32>
    %c4 = arith.constant 4 : index
    %c0_21 = arith.constant 0 : index
    %c0_22 = arith.constant 0 : index
    %29 = vector.load %arg1[%c4, %c0_21, %c0_22] : memref<5x32x32xbf16, #tpu.memory_space<vmem>>, vector<1x32x32xbf16>
    %30 = vector.shape_cast %29 : vector<1x32x32xbf16> to vector<32x32xbf16>
    %31 = vector.extract_strided_slice %8 {offsets = [0, 512], sizes = [32, 128], strides = [1, 1]} : vector<32x640xbf16> to vector<32x128xbf16>
    %cst_23 = arith.constant dense<0.000000e+00> : vector<32x128xf32>
    %32 = tpu.matmul %30, %31, %cst_23 {dimension_numbers = #tpu.dot_dimension_numbers<[1], [0], [0], [1], [0, 0, 1, 1], [], []>} : vector<32x32xbf16>, vector<32x128xbf16>, vector<32x128xf32> -> vector<32x128xf32>
    %33 = arith.addf %28, %32 : vector<32x128xf32>
    %cst_24 = arith.constant 0.000000e+00 : f32
    %34 = vector.broadcast %cst_24 : f32 to vector<32x128xf32>
    %35 = arith.maximumf %33, %34 : vector<32x128xf32>
    %36 = arith.truncf %35 : vector<32x128xf32> to vector<32x128xbf16>
    %c0_25 = arith.constant 0 : index
    %c0_26 = arith.constant 0 : index
    %37 = vector.load %arg5[%c0_25, %c0_26] : memref<128x640xbf16, #tpu.memory_space<vmem>>, vector<128x640xbf16>
    %c0_27 = arith.constant 0 : index
    %c0_28 = arith.constant 0 : index
    %38 = vector.load %arg6[%c0_27, %c0_28] : memref<128x128xbf16, #tpu.memory_space<vmem>>, vector<128x128xbf16>
    %c0_29 = arith.constant 0 : index
    %c0_30 = arith.constant 0 : index
    %39 = vector.load %arg7[%c0_29, %c0_30] : memref<1x128xf32, #tpu.memory_space<vmem>>, vector<1x128xf32>
    %cst_31 = arith.constant dense<0.000000e+00> : vector<32x640xf32>
    %40 = tpu.matmul %36, %37, %cst_31 {dimension_numbers = #tpu.dot_dimension_numbers<[1], [0], [0], [1], [0, 0, 1, 1], [], []>} : vector<32x128xbf16>, vector<128x640xbf16>, vector<32x640xf32> -> vector<32x640xf32>
    %cst_32 = arith.constant dense<0.000000e+00> : vector<32x128xf32>
    %41 = tpu.matmul %36, %38, %cst_32 {dimension_numbers = #tpu.dot_dimension_numbers<[1], [0], [0], [1], [0, 0, 1, 1], [], []>} : vector<32x128xbf16>, vector<128x128xbf16>, vector<32x128xf32> -> vector<32x128xf32>
    %42 = vector.broadcast %39 : vector<1x128xf32> to vector<32x128xf32>
    %43 = arith.addf %41, %42 : vector<32x128xf32>
    %44 = arith.truncf %40 : vector<32x640xf32> to vector<32x640xbf16>
    %c0_33 = arith.constant 0 : index
    %c0_34 = arith.constant 0 : index
    %c0_35 = arith.constant 0 : index
    %45 = vector.load %arg1[%c0_33, %c0_34, %c0_35] : memref<5x32x32xbf16, #tpu.memory_space<vmem>>, vector<1x32x32xbf16>
    %46 = vector.shape_cast %45 : vector<1x32x32xbf16> to vector<32x32xbf16>
    %47 = vector.extract_strided_slice %44 {offsets = [0, 0], sizes = [32, 128], strides = [1, 1]} : vector<32x640xbf16> to vector<32x128xbf16>
    %cst_36 = arith.constant dense<0.000000e+00> : vector<32x128xf32>
    %48 = tpu.matmul %46, %47, %cst_36 {dimension_numbers = #tpu.dot_dimension_numbers<[1], [0], [0], [1], [0, 0, 1, 1], [], []>} : vector<32x32xbf16>, vector<32x128xbf16>, vector<32x128xf32> -> vector<32x128xf32>
    %49 = arith.addf %43, %48 : vector<32x128xf32>
    %c1_37 = arith.constant 1 : index
    %c0_38 = arith.constant 0 : index
    %c0_39 = arith.constant 0 : index
    %50 = vector.load %arg1[%c1_37, %c0_38, %c0_39] : memref<5x32x32xbf16, #tpu.memory_space<vmem>>, vector<1x32x32xbf16>
    %51 = vector.shape_cast %50 : vector<1x32x32xbf16> to vector<32x32xbf16>
    %52 = vector.extract_strided_slice %44 {offsets = [0, 128], sizes = [32, 128], strides = [1, 1]} : vector<32x640xbf16> to vector<32x128xbf16>
    %cst_40 = arith.constant dense<0.000000e+00> : vector<32x128xf32>
    %53 = tpu.matmul %51, %52, %cst_40 {dimension_numbers = #tpu.dot_dimension_numbers<[1], [0], [0], [1], [0, 0, 1, 1], [], []>} : vector<32x32xbf16>, vector<32x128xbf16>, vector<32x128xf32> -> vector<32x128xf32>
    %54 = arith.addf %49, %53 : vector<32x128xf32>
    %c2_41 = arith.constant 2 : index
    %c0_42 = arith.constant 0 : index
    %c0_43 = arith.constant 0 : index
    %55 = vector.load %arg1[%c2_41, %c0_42, %c0_43] : memref<5x32x32xbf16, #tpu.memory_space<vmem>>, vector<1x32x32xbf16>
    %56 = vector.shape_cast %55 : vector<1x32x32xbf16> to vector<32x32xbf16>
    %57 = vector.extract_strided_slice %44 {offsets = [0, 256], sizes = [32, 128], strides = [1, 1]} : vector<32x640xbf16> to vector<32x128xbf16>
    %cst_44 = arith.constant dense<0.000000e+00> : vector<32x128xf32>
    %58 = tpu.matmul %56, %57, %cst_44 {dimension_numbers = #tpu.dot_dimension_numbers<[1], [0], [0], [1], [0, 0, 1, 1], [], []>} : vector<32x32xbf16>, vector<32x128xbf16>, vector<32x128xf32> -> vector<32x128xf32>
    %59 = arith.addf %54, %58 : vector<32x128xf32>
    %c3_45 = arith.constant 3 : index
    %c0_46 = arith.constant 0 : index
    %c0_47 = arith.constant 0 : index
    %60 = vector.load %arg1[%c3_45, %c0_46, %c0_47] : memref<5x32x32xbf16, #tpu.memory_space<vmem>>, vector<1x32x32xbf16>
    %61 = vector.shape_cast %60 : vector<1x32x32xbf16> to vector<32x32xbf16>
    %62 = vector.extract_strided_slice %44 {offsets = [0, 384], sizes = [32, 128], strides = [1, 1]} : vector<32x640xbf16> to vector<32x128xbf16>
    %cst_48 = arith.constant dense<0.000000e+00> : vector<32x128xf32>
    %63 = tpu.matmul %61, %62, %cst_48 {dimension_numbers = #tpu.dot_dimension_numbers<[1], [0], [0], [1], [0, 0, 1, 1], [], []>} : vector<32x32xbf16>, vector<32x128xbf16>, vector<32x128xf32> -> vector<32x128xf32>
    %64 = arith.addf %59, %63 : vector<32x128xf32>
    %c4_49 = arith.constant 4 : index
    %c0_50 = arith.constant 0 : index
    %c0_51 = arith.constant 0 : index
    %65 = vector.load %arg1[%c4_49, %c0_50, %c0_51] : memref<5x32x32xbf16, #tpu.memory_space<vmem>>, vector<1x32x32xbf16>
    %66 = vector.shape_cast %65 : vector<1x32x32xbf16> to vector<32x32xbf16>
    %67 = vector.extract_strided_slice %44 {offsets = [0, 512], sizes = [32, 128], strides = [1, 1]} : vector<32x640xbf16> to vector<32x128xbf16>
    %cst_52 = arith.constant dense<0.000000e+00> : vector<32x128xf32>
    %68 = tpu.matmul %66, %67, %cst_52 {dimension_numbers = #tpu.dot_dimension_numbers<[1], [0], [0], [1], [0, 0, 1, 1], [], []>} : vector<32x32xbf16>, vector<32x128xbf16>, vector<32x128xf32> -> vector<32x128xf32>
    %69 = arith.addf %64, %68 : vector<32x128xf32>
    %cst_53 = arith.constant 0.000000e+00 : f32
    %70 = vector.broadcast %cst_53 : f32 to vector<32x128xf32>
    %71 = arith.maximumf %69, %70 : vector<32x128xf32>
    %72 = arith.truncf %71 : vector<32x128xf32> to vector<32x128xbf16>
    %c0_54 = arith.constant 0 : index
    %c0_55 = arith.constant 0 : index
    %73 = vector.load %arg8[%c0_54, %c0_55] : memref<128x128xbf16, #tpu.memory_space<vmem>>, vector<128x128xbf16>
    %cst_56 = arith.constant dense<0.000000e+00> : vector<32x128xf32>
    %74 = tpu.matmul %72, %73, %cst_56 {dimension_numbers = #tpu.dot_dimension_numbers<[1], [0], [0], [1], [0, 0, 1, 1], [], []>} : vector<32x128xbf16>, vector<128x128xbf16>, vector<32x128xf32> -> vector<32x128xf32>
    %c0_57 = arith.constant 0 : index
    %c0_58 = arith.constant 0 : index
    %75 = vector.load %arg9[%c0_57, %c0_58] : memref<1x128xf32, #tpu.memory_space<vmem>>, vector<1x128xf32>
    %76 = vector.broadcast %75 : vector<1x128xf32> to vector<32x128xf32>
    %77 = arith.addf %74, %76 : vector<32x128xf32>
    %cst_59 = arith.constant 0.000000e+00 : f32
    %78 = vector.broadcast %cst_59 : f32 to vector<32x128xf32>
    %79 = arith.maximumf %77, %78 : vector<32x128xf32>
    %c0_60 = arith.constant 0 : index
    %c0_61 = arith.constant 0 : index
    %80 = vector.load %arg13[%c0_60, %c0_61] : memref<32x128xf32, #tpu.memory_space<vmem>>, vector<32x128xf32>
    tpu.vector_store %arg13[%c0_60, %c0_61], %79 {strides = array<i32>} : memref<32x128xf32, #tpu.memory_space<vmem>>, vector<32x128xf32>,
    %81 = arith.truncf %79 : vector<32x128xf32> to vector<32x128xbf16>
    %c0_62 = arith.constant 0 : index
    %c0_63 = arith.constant 0 : index
    %82 = vector.load %arg10[%c0_62, %c0_63] : memref<128x128xbf16, #tpu.memory_space<vmem>>, vector<128x128xbf16>
    %cst_64 = arith.constant dense<0.000000e+00> : vector<32x128xf32>
    %83 = tpu.matmul %81, %82, %cst_64 {dimension_numbers = #tpu.dot_dimension_numbers<[1], [0], [0], [1], [0, 0, 1, 1], [], []>} : vector<32x128xbf16>, vector<128x128xbf16>, vector<32x128xf32> -> vector<32x128xf32>
    %c0_65 = arith.constant 0 : index
    %c0_66 = arith.constant 0 : index
    %84 = vector.load %arg11[%c0_65, %c0_66] : memref<1x128xf32, #tpu.memory_space<vmem>>, vector<1x128xf32>
    %85 = vector.broadcast %84 : vector<1x128xf32> to vector<32x128xf32>
    %86 = arith.addf %83, %85 : vector<32x128xf32>
    %87 = tpu.iota {dimensions = array<i32: 1>} : vector<32x128xi32>
    %c2_i32 = arith.constant 2 : i32
    %88 = vector.broadcast %c2_i32 : i32 to vector<32x128xi32>
    %89 = arith.cmpi slt, %87, %88 : vector<32x128xi32>
    %cst_67 = arith.constant -1.000000e+30 : f32
    %90 = vector.broadcast %cst_67 : f32 to vector<32x128xf32>
    %91 = arith.select %89, %86, %90 : vector<32x128xi1>, vector<32x128xf32>
    %cst_68 = arith.constant dense<0xFF800000> : vector<32xf32>
    %92 = vector.multi_reduction <maximumf>, %91, %cst_68 [1] : vector<32x128xf32> to vector<32xf32>
    %93 = vector.shape_cast %92 : vector<32xf32> to vector<32x1xf32>
    %94 = vector.broadcast %93 : vector<32x1xf32> to vector<32x128xf32>
    %95 = arith.subf %91, %94 : vector<32x128xf32>
    %96 = math.exp %95 : vector<32x128xf32>
    %cst_69 = arith.constant dense<0.000000e+00> : vector<32xf32>
    %97 = vector.multi_reduction <add>, %96, %cst_69 [1] : vector<32x128xf32> to vector<32xf32>
    %98 = vector.shape_cast %97 : vector<32xf32> to vector<32x1xf32>
    %99 = math.log %98 : vector<32x1xf32>
    %100 = vector.broadcast %99 : vector<32x1xf32> to vector<32x128xf32>
    %101 = arith.subf %95, %100 : vector<32x128xf32>
    %c0_70 = arith.constant 0 : index
    %c0_71 = arith.constant 0 : index
    %102 = vector.load %arg12[%c0_70, %c0_71] : memref<32x128xf32, #tpu.memory_space<vmem>>, vector<32x128xf32>
    tpu.vector_store %arg12[%c0_70, %c0_71], %101 {strides = array<i32>} : memref<32x128xf32, #tpu.memory_space<vmem>>, vector<32x128xf32>,
    return
  }
}

</mosaic_0001>

<llo_original>
// kernel: net_forward.1
$region0: #{net_forward.1}
  #allocation0 [shape = 'u32[]', space=smem, size = 0x4, offset = 0x4, fixed_abs, tag = 'smem constant byte address 0x4 - core index']
  #allocation1 [shape = 'u32[144,128]{1,0:T(1,128)}', space=vmem, size = 0x12000, scoped, tag = 'internal scratch']
  %s0 = inlined_call_operand.vmem [shape: bf16[32,128], index: 0, kind: input, shape index: {}]
  %s1 = inlined_call_operand.vmem [shape: bf16[5,32,32], index: 1, kind: input, shape index: {}]
  %s2 = inlined_call_operand.vmem [shape: bf16[128,640], index: 2, kind: input, shape index: {}]
  %s3 = inlined_call_operand.vmem [shape: bf16[128,128], index: 3, kind: input, shape index: {}]
  %s4 = inlined_call_operand.vmem [shape: f32[1,128], index: 4, kind: input, shape index: {}]
  %s5 = inlined_call_operand.vmem [shape: bf16[128,640], index: 5, kind: input, shape index: {}]
  %s6 = inlined_call_operand.vmem [shape: bf16[128,128], index: 6, kind: input, shape index: {}]
  %s7 = inlined_call_operand.vmem [shape: f32[1,128], index: 7, kind: input, shape index: {}]
  %s8 = inlined_call_operand.vmem [shape: bf16[128,128], index: 8, kind: input, shape index: {}]
  %s9 = inlined_call_operand.vmem [shape: f32[1,128], index: 9, kind: input, shape index: {}]
  %s10 = inlined_call_operand.vmem [shape: bf16[128,128], index: 10, kind: input, shape index: {}]
  %s11 = inlined_call_operand.vmem [shape: f32[1,128], index: 11, kind: input, shape index: {}]
  %s12 = inlined_call_operand.vmem [shape: f32[32,128], index: 12, kind: output, shape index: {0}]
  %s13 = inlined_call_operand.hbm [shape: f32[32,128], index: 13, kind: output, shape index: {1}]
  %14 = xla_tuple %s12, %s13
  %s15 = sld [smem:[#allocation0]]
  $region66: #{net_forward.1} parent=0
    _
  %s17 = ssub.s32 1, %s15
  %s18 = scalar_select 0, %s17, %s15
  $region1: #{net_forward.1} parent=0
    #allocation2 [shape = 'u8[16384]{0}', space=vmem, size = 0x4000, scoped, tag = 'output window, operand 1, single buffered']
    #allocation3 [shape = 's32[1]{0}', space=sflag, size = 0x4, scoped, tag = 'scoped memory for net_forward.1']
    %19 = vsyncpa [#allocation3], 0
    // Predicated region
    $region2: #{net_forward.1} parent=1 // pred_check
      _
    $region3: #{net_forward.1} parent=1 // pred_check_branch
      %21 = sbr.rel (0) target = $region5
    $region4: #{net_forward.1} parent=1 // pred_region
      _
    $region5: #{net_forward.1} parent=1 // pred_fallthru
      _
    // Predicated region
    $region6: #{net_forward.1} parent=1 // pred_check
      _
    $region7: #{net_forward.1} parent=1 // pred_check_branch
      %23 = sbr.rel (0) target = $region9
    $region8: #{net_forward.1} parent=1 // pred_region
      _
    $region9: #{net_forward.1} parent=1 // pred_fallthru
      _
    // Predicated region
    $region10: #{net_forward.1} parent=1 // pred_check
      _
    $region11: #{net_forward.1} parent=1 // pred_check_branch
      %25 = sbr.rel (0) target = $region13
    $region12: #{net_forward.1} parent=1 // pred_region
      _
    $region13: #{net_forward.1} parent=1 // pred_fallthru
      _
    // Predicated region
    $region14: #{net_forward.1} parent=1 // pred_check
      _
    $region15: #{net_forward.1} parent=1 // pred_check_branch
      %27 = sbr.rel (0) target = $region17
    $region16: #{net_forward.1} parent=1 // pred_region
      _
    $region17: #{net_forward.1} parent=1 // pred_fallthru
      _
    // Predicated region
    $region18: #{net_forward.1} parent=1 // pred_check
      _
    $region19: #{net_forward.1} parent=1 // pred_check_branch
      %29 = sbr.rel (0) target = $region21
    $region20: #{net_forward.1} parent=1 // pred_region
      _
    $region21: #{net_forward.1} parent=1 // pred_fallthru
      _
    // Predicated region
    $region22: #{net_forward.1} parent=1 // pred_check
      _
    $region23: #{net_forward.1} parent=1 // pred_check_branch
      %31 = sbr.rel (0) target = $region25
    $region24: #{net_forward.1} parent=1 // pred_region
      _
    $region25: #{net_forward.1} parent=1 // pred_fallthru
      _
    // Predicated region
    $region26: #{net_forward.1} parent=1 // pred_check
      _
    $region27: #{net_forward.1} parent=1 // pred_check_branch
      %33 = sbr.rel (0) target = $region29
    $region28: #{net_forward.1} parent=1 // pred_region
      _
    $region29: #{net_forward.1} parent=1 // pred_fallthru
      _
    // Predicated region
    $region30: #{net_forward.1} parent=1 // pred_check
      _
    $region31: #{net_forward.1} parent=1 // pred_check_branch
      %35 = sbr.rel (0) target = $region33
    $region32: #{net_forward.1} parent=1 // pred_region
      _
    $region33: #{net_forward.1} parent=1 // pred_fallthru
      _
    // Predicated region
    $region34: #{net_forward.1} parent=1 // pred_check
      _
    $region35: #{net_forward.1} parent=1 // pred_check_branch
      %37 = sbr.rel (0) target = $region37
    $region36: #{net_forward.1} parent=1 // pred_region
      _
    $region37: #{net_forward.1} parent=1 // pred_fallthru
      _
    // Predicated region
    $region38: #{net_forward.1} parent=1 // pred_check
      _
    $region39: #{net_forward.1} parent=1 // pred_check_branch
      %39 = sbr.rel (0) target = $region41
    $region40: #{net_forward.1} parent=1 // pred_region
      _
    $region41: #{net_forward.1} parent=1 // pred_fallthru
      _
    // Predicated region
    $region42: #{net_forward.1} parent=1 // pred_check
      _
    $region43: #{net_forward.1} parent=1 // pred_check_branch
      %41 = sbr.rel (0) target = $region45
    $region44: #{net_forward.1} parent=1 // pred_region
      _
    $region45: #{net_forward.1} parent=1 // pred_fallthru
      _
    // Predicated region
    $region46: #{net_forward.1} parent=1 // pred_check
      _
    $region47: #{net_forward.1} parent=1 // pred_check_branch
      %43 = sbr.rel (0) target = $region49
    $region48: #{net_forward.1} parent=1 // pred_region
      _
    $region49: #{net_forward.1} parent=1 // pred_fallthru
      _
    %v45 = vld [vmem:[%s0] sm:$0xf]
    %v46 = vld [vmem:[%s0 + $0x4] sm:$0xf]
    %v47 = vld [vmem:[%s0 + $0x8] sm:$0xf]
    %v48 = vld [vmem:[%s0 + $0xc] sm:$0xf]
    %v49 = vld [vmem:[%s2] sm:$0xff]
    %v50 = vld [vmem:[%s2 + $0x8] sm:$0xff]
    %v51 = vld [vmem:[%s2 + $0x10] sm:$0xf]
    %v52 = vld [vmem:[%s2 + $0x14] sm:$0xff]
    %v53 = vld [vmem:[%s2 + $0x1c] sm:$0xff]
    %v54 = vld [vmem:[%s2 + $0x24] sm:$0xf]
    %v55 = vld [vmem:[%s2 + $0x28] sm:$0xff]
    %v56 = vld [vmem:[%s2 + $0x30] sm:$0xff]
    %v57 = vld [vmem:[%s2 + $0x38] sm:$0xf]
    %v58 = vld [vmem:[%s2 + $0x3c] sm:$0xff]
    %v59 = vld [vmem:[%s2 + $0x44] sm:$0xff]
    %v60 = vld [vmem:[%s2 + $0x4c] sm:$0xf]
    %v61 = vld [vmem:[%s2 + $0x50] sm:$0xff]
    %v62 = vld [vmem:[%s2 + $0x58] sm:$0xff]
    %v63 = vld [vmem:[%s2 + $0x60] sm:$0xf]
    %v64 = vld [vmem:[%s2 + $0x64] sm:$0xff]
    %v65 = vld [vmem:[%s2 + $0x6c] sm:$0xff]
    %v66 = vld [vmem:[%s2 + $0x74] sm:$0xf]
    %v67 = vld [vmem:[%s2 + $0x78] sm:$0xff]
    %v68 = vld [vmem:[%s2 + $0x80] sm:$0xff]
    %v69 = vld [vmem:[%s2 + $0x88] sm:$0xf]
    %v70 = vld [vmem:[%s2 + $0x8c] sm:$0xff]
    %v71 = vld [vmem:[%s2 + $0x94] sm:$0xff]
    %v72 = vld [vmem:[%s2 + $0x9c] sm:$0xf]
    %v73 = vld [vmem:[%s2 + $0xa0] sm:$0xff]
    %v74 = vld [vmem:[%s2 + $0xa8] sm:$0xff]
    %v75 = vld [vmem:[%s2 + $0xb0] sm:$0xf]
    %v76 = vld [vmem:[%s2 + $0xb4] sm:$0xff]
    %v77 = vld [vmem:[%s2 + $0xbc] sm:$0xff]
    %v78 = vld [vmem:[%s2 + $0xc4] sm:$0xf]
    %v79 = vld [vmem:[%s2 + $0xc8] sm:$0xff]
    %v80 = vld [vmem:[%s2 + $0xd0] sm:$0xff]
    %v81 = vld [vmem:[%s2 + $0xd8] sm:$0xf]
    %v82 = vld [vmem:[%s2 + $0xdc] sm:$0xff]
    %v83 = vld [vmem:[%s2 + $0xe4] sm:$0xff]
    %v84 = vld [vmem:[%s2 + $0xec] sm:$0xf]
    %v85 = vld [vmem:[%s2 + $0xf0] sm:$0xff]
    %v86 = vld [vmem:[%s2 + $0xf8] sm:$0xff]
    %v87 = vld [vmem:[%s2 + $0x100] sm:$0xf]
    %v88 = vld [vmem:[%s2 + $0x104] sm:$0xff]
    %v89 = vld [vmem:[%s2 + $0x10c] sm:$0xff]
    %v90 = vld [vmem:[%s2 + $0x114] sm:$0xf]
    %v91 = vld [vmem:[%s2 + $0x118] sm:$0xff]
    %v92 = vld [vmem:[%s2 + $0x120] sm:$0xff]
    %v93 = vld [vmem:[%s2 + $0x128] sm:$0xf]
    %v94 = vld [vmem:[%s2 + $0x12c] sm:$0xff]
    %v95 = vld [vmem:[%s2 + $0x134] sm:$0xff]
    %v96 = vld [vmem:[%s2 + $0x13c] sm:$0xf]
    %v97 = vld [vmem:[%s3] sm:$0xf]
    %v98 = vld [vmem:[%s3 + $0x4] sm:$0xf]
    %v99 = vld [vmem:[%s3 + $0x8] sm:$0xf]
    %v100 = vld [vmem:[%s3 + $0xc] sm:$0xf]
    %v101 = vld [vmem:[%s3 + $0x10] sm:$0xf]
    %v102 = vld [vmem:[%s3 + $0x14] sm:$0xf]
    %v103 = vld [vmem:[%s3 + $0x18] sm:$0xf]
    %v104 = vld [vmem:[%s3 + $0x1c] sm:$0xf]
    %v105 = vld [vmem:[%s3 + $0x20] sm:$0xf]
    %v106 = vld [vmem:[%s3 + $0x24] sm:$0xf]
    %v107 = vld [vmem:[%s3 + $0x28] sm:$0xf]
    %v108 = vld [vmem:[%s3 + $0x2c] sm:$0xf]
    %v109 = vld [vmem:[%s3 + $0x30] sm:$0xf]
    %v110 = vld [vmem:[%s3 + $0x34] sm:$0xf]
    %v111 = vld [vmem:[%s3 + $0x38] sm:$0xf]
    %v112 = vld [vmem:[%s3 + $0x3c] sm:$0xf]
    %v113 = vld [vmem:[%s4] sm:$0x1]
    %v118 = vunpack.c.l.b16 %v45
    %v119 = vunpack.c.l.b16 %v46
    %v120 = vunpack.c.l.b16 %v47
    %v121 = vunpack.c.l.b16 %v48
    %v122 = vpack.c.b16 %v119, %v118
    %v123 = vpack.c.b16 %v121, %v120
    %v174 = vunpack.c.l.b16 %v49
    %v175 = vunpack.c.h.b16 %v49
    %v176 = vunpack.c.l.b16 %v50
    %v177 = vunpack.c.h.b16 %v50
    %v178 = vunpack.c.l.b16 %v51
    %v179 = vunpack.c.l.b16 %v52
    %v180 = vunpack.c.h.b16 %v52
    %v181 = vunpack.c.l.b16 %v53
    %v182 = vunpack.c.h.b16 %v53
    %v183 = vunpack.c.l.b16 %v54
    %v184 = vunpack.c.l.b16 %v55
    %v185 = vunpack.c.h.b16 %v55
    %v186 = vunpack.c.l.b16 %v56
    %v187 = vunpack.c.h.b16 %v56
    %v188 = vunpack.c.l.b16 %v57
    %v189 = vunpack.c.l.b16 %v58
    %v190 = vunpack.c.h.b16 %v58
    %v191 = vunpack.c.l.b16 %v59
    %v192 = vunpack.c.h.b16 %v59
    %v193 = vunpack.c.l.b16 %v60
    %v194 = vunpack.c.l.b16 %v61
    %v195 = vunpack.c.h.b16 %v61
    %v196 = vunpack.c.l.b16 %v62
    %v197 = vunpack.c.h.b16 %v62
    %v198 = vunpack.c.l.b16 %v63
    %v199 = vunpack.c.l.b16 %v64
    %v200 = vunpack.c.h.b16 %v64
    %v201 = vunpack.c.l.b16 %v65
    %v202 = vunpack.c.h.b16 %v65
    %v203 = vunpack.c.l.b16 %v66
    %v204 = vunpack.c.l.b16 %v67
    %v205 = vunpack.c.h.b16 %v67
    %v206 = vunpack.c.l.b16 %v68
    %v207 = vunpack.c.h.b16 %v68
    %v208 = vunpack.c.l.b16 %v69
    %v209 = vunpack.c.l.b16 %v70
    %v210 = vunpack.c.h.b16 %v70
    %v211 = vunpack.c.l.b16 %v71
    %v212 = vunpack.c.h.b16 %v71
    %v213 = vunpack.c.l.b16 %v72
    %v214 = vunpack.c.l.b16 %v73
    %v215 = vunpack.c.h.b16 %v73
    %v216 = vunpack.c.l.b16 %v74
    %v217 = vunpack.c.h.b16 %v74
    %v218 = vunpack.c.l.b16 %v75
    %v219 = vunpack.c.l.b16 %v76
    %v220 = vunpack.c.h.b16 %v76
    %v221 = vunpack.c.l.b16 %v77
    %v222 = vunpack.c.h.b16 %v77
    %v223 = vunpack.c.l.b16 %v78
    %v224 = vunpack.c.l.b16 %v79
    %v225 = vunpack.c.h.b16 %v79
    %v226 = vunpack.c.l.b16 %v80
    %v227 = vunpack.c.h.b16 %v80
    %v228 = vunpack.c.l.b16 %v81
    %v229 = vunpack.c.l.b16 %v82
    %v230 = vunpack.c.h.b16 %v82
    %v231 = vunpack.c.l.b16 %v83
    %v232 = vunpack.c.h.b16 %v83
    %v233 = vunpack.c.l.b16 %v84
    %v234 = vunpack.c.l.b16 %v85
    %v235 = vunpack.c.h.b16 %v85
    %v236 = vunpack.c.l.b16 %v86
    %v237 = vunpack.c.h.b16 %v86
    %v238 = vunpack.c.l.b16 %v87
    %v239 = vunpack.c.l.b16 %v88
    %v240 = vunpack.c.h.b16 %v88
    %v241 = vunpack.c.l.b16 %v89
    %v242 = vunpack.c.h.b16 %v89
    %v243 = vunpack.c.l.b16 %v90
    %v244 = vunpack.c.l.b16 %v91
    %v245 = vunpack.c.h.b16 %v91
    %v246 = vunpack.c.l.b16 %v92
    %v247 = vunpack.c.h.b16 %v92
    %v248 = vunpack.c.l.b16 %v93
    %v249 = vunpack.c.l.b16 %v94
    %v250 = vunpack.c.h.b16 %v94
    %v251 = vunpack.c.l.b16 %v95
    %v252 = vunpack.c.h.b16 %v95
    %v253 = vunpack.c.l.b16 %v96
    %v254 = vpack.c.b16 %v179, %v174
    %v255 = vpack.c.b16 %v180, %v175
    %v256 = vpack.c.b16 %v181, %v176
    %v257 = vpack.c.b16 %v182, %v177
    %v258 = vpack.c.b16 %v183, %v178
    %v259 = vpack.c.b16 %v189, %v184
    %v260 = vpack.c.b16 %v190, %v185
    %v261 = vpack.c.b16 %v191, %v186
    %v262 = vpack.c.b16 %v192, %v187
    %v263 = vpack.c.b16 %v193, %v188
    %v264 = vpack.c.b16 %v199, %v194
    %v265 = vpack.c.b16 %v200, %v195
    %v266 = vpack.c.b16 %v201, %v196
    %v267 = vpack.c.b16 %v202, %v197
    %v268 = vpack.c.b16 %v203, %v198
    %v269 = vpack.c.b16 %v209, %v204
    %v270 = vpack.c.b16 %v210, %v205
    %v271 = vpack.c.b16 %v211, %v206
    %v272 = vpack.c.b16 %v212, %v207
    %v273 = vpack.c.b16 %v213, %v208
    %v274 = vpack.c.b16 %v219, %v214
    %v275 = vpack.c.b16 %v220, %v215
    %v276 = vpack.c.b16 %v221, %v216
    %v277 = vpack.c.b16 %v222, %v217
    %v278 = vpack.c.b16 %v223, %v218
    %v279 = vpack.c.b16 %v229, %v224
    %v280 = vpack.c.b16 %v230, %v225
    %v281 = vpack.c.b16 %v231, %v226
    %v282 = vpack.c.b16 %v232, %v227
    %v283 = vpack.c.b16 %v233, %v228
    %v284 = vpack.c.b16 %v239, %v234
    %v285 = vpack.c.b16 %v240, %v235
    %v286 = vpack.c.b16 %v241, %v236
    %v287 = vpack.c.b16 %v242, %v237
    %v288 = vpack.c.b16 %v243, %v238
    %v289 = vpack.c.b16 %v249, %v244
    %v290 = vpack.c.b16 %v250, %v245
    %v291 = vpack.c.b16 %v251, %v246
    %v292 = vpack.c.b16 %v252, %v247
    %v293 = vpack.c.b16 %v253, %v248
    %334 = vmatprep.subr.bf16.mxu0 %v255
    %335 = vmatpush1.bf16.msra.mxu0 %v254
    %336 = vmatprep.subr.bf16.mxu0 %v260
    %337 = vmatpush1.bf16.msra.mxu0 %v259
    %338 = vmatprep.subr.bf16.mxu0 %v265
    %339 = vmatpush1.bf16.msra.mxu0 %v264
    %340 = vmatprep.subr.bf16.mxu0 %v270
    %341 = vmatpush1.bf16.msra.mxu0 %v269
    %342 = vmatprep.subr.bf16.mxu0 %v275
    %343 = vmatpush1.bf16.msra.mxu0 %v274
    %344 = vmatprep.subr.bf16.mxu0 %v280
    %345 = vmatpush1.bf16.msra.mxu0 %v279
    %346 = vmatprep.subr.bf16.mxu0 %v285
    %347 = vmatpush1.bf16.msra.mxu0 %v284
    %348 = vmatprep.subr.bf16.mxu0 %v290
    %349 = vmatpush1.bf16.msra.mxu0 %v289
    %350 = vmatprep.subr.bf16.mxu0 0
    %351 = vmatpush1.bf16.msra.mxu0 0
    %352 = vmatprep.subr.bf16.mxu0 0
    %353 = vmatpush1.bf16.msra.mxu0 0
    %354 = vmatprep.subr.bf16.mxu0 0
    %355 = vmatpush1.bf16.msra.mxu0 0
    %356 = vmatprep.subr.bf16.mxu0 0
    %357 = vmatpush1.bf16.msra.mxu0 0
    %358 = vmatprep.subr.bf16.mxu0 0
    %359 = vmatpush1.bf16.msra.mxu0 0
    %360 = vmatprep.subr.bf16.mxu0 0
    %361 = vmatpush1.bf16.msra.mxu0 0
    %362 = vmatprep.subr.bf16.mxu0 0
    %363 = vmatpush1.bf16.msra.mxu0 0
    %364 = vmatprep.subr.bf16.mxu0 0
    %365 = vmatpush1.bf16.msra.mxu0 0
    %366 = vmatprep.mubr.bf16.mxu0 0
    %367 = vmatmul.mubr.bf16.gmra.mrb[0].mxu0 %v122
    %v368 = vpop.f32.mrb[0].mxu0
    %v369 = vadd.f32 0.0, %v368
    %v370 = vpop.f32.mrb[0].mxu0
    %v371 = vadd.f32 0.0, %v370
    %v372 = vpop.f32.mrb[0].mxu0
    %v373 = vadd.f32 0.0, %v372
    %v374 = vpop.f32.mrb[0].mxu0
    %v375 = vadd.f32 0.0, %v374
    %376 = vmatprep.mubr.bf16.mxu0 0
    %377 = vmatmul.mubr.bf16.gmra.mrb[0].mxu0 %v123
    %v378 = vpop.f32.mrb[0].mxu0
    %v379 = vadd.f32 0.0, %v378
    %v380 = vpop.f32.mrb[0].mxu0
    %v381 = vadd.f32 0.0, %v380
    %v382 = vpop.f32.mrb[0].mxu0
    %v383 = vadd.f32 0.0, %v382
    %v384 = vpop.f32.mrb[0].mxu0
    %v385 = vadd.f32 0.0, %v384
    %386 = vdwg.mxu0
    %387 = vmatprep.subr.bf16.mxu0 %v257
    %388 = vmatpush1.bf16.msra.mxu0 %v256
    %389 = vmatprep.subr.bf16.mxu0 %v262
    %390 = vmatpush1.bf16.msra.mxu0 %v261
    %391 = vmatprep.subr.bf16.mxu0 %v267
    %392 = vmatpush1.bf16.msra.mxu0 %v266
    %393 = vmatprep.subr.bf16.mxu0 %v272
    %394 = vmatpush1.bf16.msra.mxu0 %v271
    %395 = vmatprep.subr.bf16.mxu0 %v277
    %396 = vmatpush1.bf16.msra.mxu0 %v276
    %397 = vmatprep.subr.bf16.mxu0 %v282
    %398 = vmatpush1.bf16.msra.mxu0 %v281
    %399 = vmatprep.subr.bf16.mxu0 %v287
    %400 = vmatpush1.bf16.msra.mxu0 %v286
    %401 = vmatprep.subr.bf16.mxu0 %v292
    %402 = vmatpush1.bf16.msra.mxu0 %v291
    %403 = vmatprep.subr.bf16.mxu0 0
    %404 = vmatpush1.bf16.msra.mxu0 0
    %405 = vmatprep.subr.bf16.mxu0 0
    %406 = vmatpush1.bf16.msra.mxu0 0
    %407 = vmatprep.subr.bf16.mxu0 0
    %408 = vmatpush1.bf16.msra.mxu0 0
    %409 = vmatprep.subr.bf16.mxu0 0
    %410 = vmatpush1.bf16.msra.mxu0 0
    %411 = vmatprep.subr.bf16.mxu0 0
    %412 = vmatpush1.bf16.msra.mxu0 0
    %413 = vmatprep.subr.bf16.mxu0 0
    %414 = vmatpush1.bf16.msra.mxu0 0
    %415 = vmatprep.subr.bf16.mxu0 0
    %416 = vmatpush1.bf16.msra.mxu0 0
    %417 = vmatprep.subr.bf16.mxu0 0
    %418 = vmatpush1.bf16.msra.mxu0 0
    %419 = vmatprep.mubr.bf16.mxu0 0
    %420 = vmatmul.mubr.bf16.gmra.mrb[0].mxu0 %v122
    %v421 = vpop.f32.mrb[0].mxu0
    %v422 = vadd.f32 0.0, %v421
    %v423 = vpop.f32.mrb[0].mxu0
    %v424 = vadd.f32 0.0, %v423
    %v425 = vpop.f32.mrb[0].mxu0
    %v426 = vadd.f32 0.0, %v425
    %v427 = vpop.f32.mrb[0].mxu0
    %v428 = vadd.f32 0.0, %v427
    %429 = vmatprep.mubr.bf16.mxu0 0
    %430 = vmatmul.mubr.bf16.gmra.mrb[0].mxu0 %v123
    %v431 = vpop.f32.mrb[0].mxu0
    %v432 = vadd.f32 0.0, %v431
    %v433 = vpop.f32.mrb[0].mxu0
    %v434 = vadd.f32 0.0, %v433
    %v435 = vpop.f32.mrb[0].mxu0
    %v436 = vadd.f32 0.0, %v435
    %v437 = vpop.f32.mrb[0].mxu0
    %v438 = vadd.f32 0.0, %v437
    %439 = vdwg.mxu0
    %440 = vmatprep.subr.bf16.mxu0 0
    %441 = vmatpush1.bf16.msra.mxu0 %v258
    %442 = vmatprep.subr.bf16.mxu0 0
    %443 = vmatpush1.bf16.msra.mxu0 %v263
    %444 = vmatprep.subr.bf16.mxu0 0
    %445 = vmatpush1.bf16.msra.mxu0 %v268
    %446 = vmatprep.subr.bf16.mxu0 0
    %447 = vmatpush1.bf16.msra.mxu0 %v273
    %448 = vmatprep.subr.bf16.mxu0 0
    %449 = vmatpush1.bf16.msra.mxu0 %v278
    %450 = vmatprep.subr.bf16.mxu0 0
    %451 = vmatpush1.bf16.msra.mxu0 %v283
    %452 = vmatprep.subr.bf16.mxu0 0
    %453 = vmatpush1.bf16.msra.mxu0 %v288
    %454 = vmatprep.subr.bf16.mxu0 0
    %455 = vmatpush1.bf16.msra.mxu0 %v293
    %456 = vmatprep.subr.bf16.mxu0 0
    %457 = vmatpush1.bf16.msra.mxu0 0
    %458 = vmatprep.subr.bf16.mxu0 0
    %459 = vmatpush1.bf16.msra.mxu0 0
    %460 = vmatprep.subr.bf16.mxu0 0
    %461 = vmatpush1.bf16.msra.mxu0 0
    %462 = vmatprep.subr.bf16.mxu0 0
    %463 = vmatpush1.bf16.msra.mxu0 0
    %464 = vmatprep.subr.bf16.mxu0 0
    %465 = vmatpush1.bf16.msra.mxu0 0
    %466 = vmatprep.subr.bf16.mxu0 0
    %467 = vmatpush1.bf16.msra.mxu0 0
    %468 = vmatprep.subr.bf16.mxu0 0
    %469 = vmatpush1.bf16.msra.mxu0 0
    %470 = vmatprep.subr.bf16.mxu0 0
    %471 = vmatpush1.bf16.msra.mxu0 0
    %472 = vmatprep.mubr.bf16.mxu0 0
    %473 = vmatmul.mubr.bf16.gmra.mrb[0].mxu0 %v122
    %v474 = vpop.f32.mrb[0].mxu0
    %v475 = vadd.f32 0.0, %v474
    %v476 = vpop.f32.mrb[0].mxu0
    %v477 = vpop.f32.mrb[0].mxu0
    %v478 = vadd.f32 0.0, %v477
    %v479 = vpop.f32.mrb[0].mxu0
    %480 = vmatprep.mubr.bf16.mxu0 0
    %481 = vmatmul.mubr.bf16.gmra.mrb[0].mxu0 %v123
    %v482 = vpop.f32.mrb[0].mxu0
    %v483 = vadd.f32 0.0, %v482
    %v484 = vpop.f32.mrb[0].mxu0
    %v485 = vpop.f32.mrb[0].mxu0
    %v486 = vadd.f32 0.0, %v485
    %v487 = vpop.f32.mrb[0].mxu0
    %488 = vdwg.mxu0
    %v490 = vlaneseq
    %v491 = vshrl.u32 %v490, 7
    %v492 = vsub.s32 0, %v491
    %v493 = vrot.slane %v113, %v492
    %v511 = vunpack.c.l.b16 %v97
    %v512 = vunpack.c.l.b16 %v98
    %v513 = vunpack.c.l.b16 %v99
    %v514 = vunpack.c.l.b16 %v100
    %v515 = vunpack.c.l.b16 %v101
    %v516 = vunpack.c.l.b16 %v102
    %v517 = vunpack.c.l.b16 %v103
    %v518 = vunpack.c.l.b16 %v104
    %v519 = vunpack.c.l.b16 %v105
    %v520 = vunpack.c.l.b16 %v106
    %v521 = vunpack.c.l.b16 %v107
    %v522 = vunpack.c.l.b16 %v108
    %v523 = vunpack.c.l.b16 %v109
    %v524 = vunpack.c.l.b16 %v110
    %v525 = vunpack.c.l.b16 %v111
    %v526 = vunpack.c.l.b16 %v112
    %v527 = vpack.c.b16 %v512, %v511
    %v528 = vpack.c.b16 %v514, %v513
    %v529 = vpack.c.b16 %v516, %v515
    %v530 = vpack.c.b16 %v518, %v517
    %v531 = vpack.c.b16 %v520, %v519
    %v532 = vpack.c.b16 %v522, %v521
    %v533 = vpack.c.b16 %v524, %v523
    %v534 = vpack.c.b16 %v526, %v525
    %543 = vmatprep.subr.bf16.mxu0 0
    %544 = vmatpush1.bf16.msra.mxu0 %v527
    %545 = vmatprep.subr.bf16.mxu0 0
    %546 = vmatpush1.bf16.msra.mxu0 %v528
    %547 = vmatprep.subr.bf16.mxu0 0
    %548 = vmatpush1.bf16.msra.mxu0 %v529
    %549 = vmatprep.subr.bf16.mxu0 0
    %550 = vmatpush1.bf16.msra.mxu0 %v530
    %551 = vmatprep.subr.bf16.mxu0 0
    %552 = vmatpush1.bf16.msra.mxu0 %v531
    %553 = vmatprep.subr.bf16.mxu0 0
    %554 = vmatpush1.bf16.msra.mxu0 %v532
    %555 = vmatprep.subr.bf16.mxu0 0
    %556 = vmatpush1.bf16.msra.mxu0 %v533
    %557 = vmatprep.subr.bf16.mxu0 0
    %558 = vmatpush1.bf16.msra.mxu0 %v534
    %559 = vmatprep.subr.bf16.mxu0 0
    %560 = vmatpush1.bf16.msra.mxu0 0
    %561 = vmatprep.subr.bf16.mxu0 0
    %562 = vmatpush1.bf16.msra.mxu0 0
    %563 = vmatprep.subr.bf16.mxu0 0
    %564 = vmatpush1.bf16.msra.mxu0 0
    %565 = vmatprep.subr.bf16.mxu0 0
    %566 = vmatpush1.bf16.msra.mxu0 0
    %567 = vmatprep.subr.bf16.mxu0 0
    %568 = vmatpush1.bf16.msra.mxu0 0
    %569 = vmatprep.subr.bf16.mxu0 0
    %570 = vmatpush1.bf16.msra.mxu0 0
    %571 = vmatprep.subr.bf16.mxu0 0
    %572 = vmatpush1.bf16.msra.mxu0 0
    %573 = vmatprep.subr.bf16.mxu0 0
    %574 = vmatpush1.bf16.msra.mxu0 0
    %575 = vmatprep.mubr.bf16.mxu0 0
    %576 = vmatmul.mubr.bf16.gmra.mrb[0].mxu0 %v122
    %v577 = vpop.f32.mrb[0].mxu0
    %v578 = vadd.f32 %v493, %v577
    %v579 = vpop.f32.mrb[0].mxu0
    %v580 = vpop.f32.mrb[0].mxu0
    %v581 = vadd.f32 %v493, %v580
    %v582 = vpop.f32.mrb[0].mxu0
    %583 = vmatprep.mubr.bf16.mxu0 0
    %584 = vmatmul.mubr.bf16.gmra.mrb[0].mxu0 %v123
    %v585 = vpop.f32.mrb[0].mxu0
    %v586 = vadd.f32 %v493, %v585
    %v587 = vpop.f32.mrb[0].mxu0
    %v588 = vpop.f32.mrb[0].mxu0
    %v589 = vadd.f32 %v493, %v588
    %v590 = vpop.f32.mrb[0].mxu0
    %591 = vdwg.mxu0
    %v592 = vpack.c.bf16 %v373, %v369
    %v593 = vpack.c.bf16 %v375, %v371
    %v594 = vpack.c.bf16 %v426, %v422
    %v595 = vpack.c.bf16 %v428, %v424
    %v596 = vpack.c.bf16 %v478, %v475
    %v597 = vpack.c.bf16 %v383, %v379
    %v598 = vpack.c.bf16 %v385, %v381
    %v599 = vpack.c.bf16 %v436, %v432
    %v600 = vpack.c.bf16 %v438, %v434
    %v601 = vpack.c.bf16 %v486, %v483
    %v602 = vld [vmem:[%s1] sm:$0xf]
    %v603 = vld [vmem:[%s1 + $0x4] sm:$0xf]
    %v604 = vld [vmem:[%s1 + $0x8] sm:$0xf]
    %v605 = vld [vmem:[%s1 + $0xc] sm:$0xf]
    %v610 = vunpack.c.l.b16 %v602
    %v611 = vunpack.c.l.b16 %v603
    %v612 = vunpack.c.l.b16 %v604
    %v613 = vunpack.c.l.b16 %v605
    %v614 = vpack.c.b16 %v611, %v610
    %v615 = vpack.c.b16 %v613, %v612
    %vm616 = vcmask 261120
    %v618 = vsel %vm616, %v614, 0
    %v621 = vsel %vm616, %v615, 0
    %623 = vmatprep.subr.bf16.mxu0 0
    %624 = vmatpush1.bf16.msra.mxu0 %v592
    %625 = vmatprep.subr.bf16.mxu0 0
    %626 = vmatpush1.bf16.msra.mxu0 %v597
    %627 = vmatprep.subr.bf16.mxu0 0
    %628 = vmatpush1.bf16.msra.mxu0 0
    %629 = vmatprep.subr.bf16.mxu0 0
    %630 = vmatpush1.bf16.msra.mxu0 0
    %631 = vmatprep.subr.bf16.mxu0 0
    %632 = vmatpush1.bf16.msra.mxu0 0
    %633 = vmatprep.subr.bf16.mxu0 0
    %634 = vmatpush1.bf16.msra.mxu0 0
    %635 = vmatprep.subr.bf16.mxu0 0
    %636 = vmatpush1.bf16.msra.mxu0 0
    %637 = vmatprep.subr.bf16.mxu0 0
    %638 = vmatpush1.bf16.msra.mxu0 0
    %639 = vmatprep.subr.bf16.mxu0 0
    %640 = vmatpush1.bf16.msra.mxu0 0
    %641 = vmatprep.subr.bf16.mxu0 0
    %642 = vmatpush1.bf16.msra.mxu0 0
    %643 = vmatprep.subr.bf16.mxu0 0
    %644 = vmatpush1.bf16.msra.mxu0 0
    %645 = vmatprep.subr.bf16.mxu0 0
    %646 = vmatpush1.bf16.msra.mxu0 0
    %647 = vmatprep.subr.bf16.mxu0 0
    %648 = vmatpush1.bf16.msra.mxu0 0
    %649 = vmatprep.subr.bf16.mxu0 0
    %650 = vmatpush1.bf16.msra.mxu0 0
    %651 = vmatprep.subr.bf16.mxu0 0
    %652 = vmatpush1.bf16.msra.mxu0 0
    %653 = vmatprep.subr.bf16.mxu0 0
    %654 = vmatpush1.bf16.msra.mxu0 0
    %655 = vmatprep.mubr.bf16.mxu0 0
    %656 = vmatmul.mubr.bf16.gmra.mrb[0].mxu0 %v618
    %v657 = vpop.f32.mrb[0].mxu0
    %v658 = vadd.f32 0.0, %v657
    %v659 = vpop.f32.mrb[0].mxu0
    %v660 = vpop.f32.mrb[0].mxu0
    %v661 = vadd.f32 0.0, %v660
    %v662 = vpop.f32.mrb[0].mxu0
    %663 = vmatprep.mubr.bf16.mxu0 0
    %664 = vmatmul.mubr.bf16.gmra.mrb[0].mxu0 %v621
    %v665 = vpop.f32.mrb[0].mxu0
    %v666 = vadd.f32 0.0, %v665
    %v667 = vpop.f32.mrb[0].mxu0
    %v668 = vpop.f32.mrb[0].mxu0
    %v669 = vadd.f32 0.0, %v668
    %v670 = vpop.f32.mrb[0].mxu0
    %671 = vdwg.mxu0
    %v672 = vadd.f32 %v578, %v658
    %v673 = vadd.f32 %v581, %v661
    %v674 = vadd.f32 %v586, %v666
    %v675 = vadd.f32 %v589, %v669
    %s676 = scalar_lea.vmem %s1, 16
    %v677 = vld [vmem:[%s676] sm:$0xf]
    %v678 = vld [vmem:[%s676 + $0x4] sm:$0xf]
    %v679 = vld [vmem:[%s676 + $0x8] sm:$0xf]
    %v680 = vld [vmem:[%s676 + $0xc] sm:$0xf]
    %v685 = vunpack.c.l.b16 %v677
    %v686 = vunpack.c.l.b16 %v678
    %v687 = vunpack.c.l.b16 %v679
    %v688 = vunpack.c.l.b16 %v680
    %v689 = vpack.c.b16 %v686, %v685
    %v690 = vpack.c.b16 %v688, %v687
    %v692 = vsel %vm616, %v689, 0
    %v695 = vsel %vm616, %v690, 0
    %697 = vmatprep.subr.bf16.mxu0 0
    %698 = vmatpush1.bf16.msra.mxu0 %v593
    %699 = vmatprep.subr.bf16.mxu0 0
    %700 = vmatpush1.bf16.msra.mxu0 %v598
    %701 = vmatprep.subr.bf16.mxu0 0
    %702 = vmatpush1.bf16.msra.mxu0 0
    %703 = vmatprep.subr.bf16.mxu0 0
    %704 = vmatpush1.bf16.msra.mxu0 0
    %705 = vmatprep.subr.bf16.mxu0 0
    %706 = vmatpush1.bf16.msra.mxu0 0
    %707 = vmatprep.subr.bf16.mxu0 0
    %708 = vmatpush1.bf16.msra.mxu0 0
    %709 = vmatprep.subr.bf16.mxu0 0
    %710 = vmatpush1.bf16.msra.mxu0 0
    %711 = vmatprep.subr.bf16.mxu0 0
    %712 = vmatpush1.bf16.msra.mxu0 0
    %713 = vmatprep.subr.bf16.mxu0 0
    %714 = vmatpush1.bf16.msra.mxu0 0
    %715 = vmatprep.subr.bf16.mxu0 0
    %716 = vmatpush1.bf16.msra.mxu0 0
    %717 = vmatprep.subr.bf16.mxu0 0
    %718 = vmatpush1.bf16.msra.mxu0 0
    %719 = vmatprep.subr.bf16.mxu0 0
    %720 = vmatpush1.bf16.msra.mxu0 0
    %721 = vmatprep.subr.bf16.mxu0 0
    %722 = vmatpush1.bf16.msra.mxu0 0
    %723 = vmatprep.subr.bf16.mxu0 0
    %724 = vmatpush1.bf16.msra.mxu0 0
    %725 = vmatprep.subr.bf16.mxu0 0
    %726 = vmatpush1.bf16.msra.mxu0 0
    %727 = vmatprep.subr.bf16.mxu0 0
    %728 = vmatpush1.bf16.msra.mxu0 0
    %729 = vmatprep.mubr.bf16.mxu0 0
    %730 = vmatmul.mubr.bf16.gmra.mrb[0].mxu0 %v692
    %v731 = vpop.f32.mrb[0].mxu0
    %v732 = vadd.f32 0.0, %v731
    %v733 = vpop.f32.mrb[0].mxu0
    %v734 = vpop.f32.mrb[0].mxu0
    %v735 = vadd.f32 0.0, %v734
    %v736 = vpop.f32.mrb[0].mxu0
    %737 = vmatprep.mubr.bf16.mxu0 0
    %738 = vmatmul.mubr.bf16.gmra.mrb[0].mxu0 %v695
    %v739 = vpop.f32.mrb[0].mxu0
    %v740 = vadd.f32 0.0, %v739
    %v741 = vpop.f32.mrb[0].mxu0
    %v742 = vpop.f32.mrb[0].mxu0
    %v743 = vadd.f32 0.0, %v742
    %v744 = vpop.f32.mrb[0].mxu0
    %745 = vdwg.mxu0
    %v746 = vadd.f32 %v672, %v732
    %v747 = vadd.f32 %v673, %v735
    %v748 = vadd.f32 %v674, %v740
    %v749 = vadd.f32 %v675, %v743
    %s750 = scalar_lea.vmem %s1, 32
    %v751 = vld [vmem:[%s750] sm:$0xf]
    %v752 = vld [vmem:[%s750 + $0x4] sm:$0xf]
    %v753 = vld [vmem:[%s750 + $0x8] sm:$0xf]
    %v754 = vld [vmem:[%s750 + $0xc] sm:$0xf]
    %v759 = vunpack.c.l.b16 %v751
    %v760 = vunpack.c.l.b16 %v752
    %v761 = vunpack.c.l.b16 %v753
    %v762 = vunpack.c.l.b16 %v754
    %v763 = vpack.c.b16 %v760, %v759
    %v764 = vpack.c.b16 %v762, %v761
    %v766 = vsel %vm616, %v763, 0
    %v769 = vsel %vm616, %v764, 0
    %771 = vmatprep.subr.bf16.mxu0 0
    %772 = vmatpush1.bf16.msra.mxu0 %v594
    %773 = vmatprep.subr.bf16.mxu0 0
    %774 = vmatpush1.bf16.msra.mxu0 %v599
    %775 = vmatprep.subr.bf16.mxu0 0
    %776 = vmatpush1.bf16.msra.mxu0 0
    %777 = vmatprep.subr.bf16.mxu0 0
    %778 = vmatpush1.bf16.msra.mxu0 0
    %779 = vmatprep.subr.bf16.mxu0 0
    %780 = vmatpush1.bf16.msra.mxu0 0
    %781 = vmatprep.subr.bf16.mxu0 0
    %782 = vmatpush1.bf16.msra.mxu0 0
    %783 = vmatprep.subr.bf16.mxu0 0
    %784 = vmatpush1.bf16.msra.mxu0 0
    %785 = vmatprep.subr.bf16.mxu0 0
    %786 = vmatpush1.bf16.msra.mxu0 0
    %787 = vmatprep.subr.bf16.mxu0 0
    %788 = vmatpush1.bf16.msra.mxu0 0
    %789 = vmatprep.subr.bf16.mxu0 0
    %790 = vmatpush1.bf16.msra.mxu0 0
    %791 = vmatprep.subr.bf16.mxu0 0
    %792 = vmatpush1.bf16.msra.mxu0 0
    %793 = vmatprep.subr.bf16.mxu0 0
    %794 = vmatpush1.bf16.msra.mxu0 0
    %795 = vmatprep.subr.bf16.mxu0 0
    %796 = vmatpush1.bf16.msra.mxu0 0
    %797 = vmatprep.subr.bf16.mxu0 0
    %798 = vmatpush1.bf16.msra.mxu0 0
    %799 = vmatprep.subr.bf16.mxu0 0
    %800 = vmatpush1.bf16.msra.mxu0 0
    %801 = vmatprep.subr.bf16.mxu0 0
    %802 = vmatpush1.bf16.msra.mxu0 0
    %803 = vmatprep.mubr.bf16.mxu0 0
    %804 = vmatmul.mubr.bf16.gmra.mrb[0].mxu0 %v766
    %v805 = vpop.f32.mrb[0].mxu0
    %v806 = vadd.f32 0.0, %v805
    %v807 = vpop.f32.mrb[0].mxu0
    %v808 = vpop.f32.mrb[0].mxu0
    %v809 = vadd.f32 0.0, %v808
    %v810 = vpop.f32.mrb[0].mxu0
    %811 = vmatprep.mubr.bf16.mxu0 0
    %812 = vmatmul.mubr.bf16.gmra.mrb[0].mxu0 %v769
    %v813 = vpop.f32.mrb[0].mxu0
    %v814 = vadd.f32 0.0, %v813
    %v815 = vpop.f32.mrb[0].mxu0
    %v816 = vpop.f32.mrb[0].mxu0
    %v817 = vadd.f32 0.0, %v816
    %v818 = vpop.f32.mrb[0].mxu0
    %819 = vdwg.mxu0
    %v820 = vadd.f32 %v746, %v806
    %v821 = vadd.f32 %v747, %v809
    %v822 = vadd.f32 %v748, %v814
    %v823 = vadd.f32 %v749, %v817
    %s824 = scalar_lea.vmem %s1, 48
    %v825 = vld [vmem:[%s824] sm:$0xf]
    %v826 = vld [vmem:[%s824 + $0x4] sm:$0xf]
    %v827 = vld [vmem:[%s824 + $0x8] sm:$0xf]
    %v828 = vld [vmem:[%s824 + $0xc] sm:$0xf]
    %v833 = vunpack.c.l.b16 %v825
    %v834 = vunpack.c.l.b16 %v826
    %v835 = vunpack.c.l.b16 %v827
    %v836 = vunpack.c.l.b16 %v828
    %v837 = vpack.c.b16 %v834, %v833
    %v838 = vpack.c.b16 %v836, %v835
    %v840 = vsel %vm616, %v837, 0
    %v843 = vsel %vm616, %v838, 0
    %845 = vmatprep.subr.bf16.mxu0 0
    %846 = vmatpush1.bf16.msra.mxu0 %v595
    %847 = vmatprep.subr.bf16.mxu0 0
    %848 = vmatpush1.bf16.msra.mxu0 %v600
    %849 = vmatprep.subr.bf16.mxu0 0
    %850 = vmatpush1.bf16.msra.mxu0 0
    %851 = vmatprep.subr.bf16.mxu0 0
    %852 = vmatpush1.bf16.msra.mxu0 0
    %853 = vmatprep.subr.bf16.mxu0 0
    %854 = vmatpush1.bf16.msra.mxu0 0
    %855 = vmatprep.subr.bf16.mxu0 0
    %856 = vmatpush1.bf16.msra.mxu0 0
    %857 = vmatprep.subr.bf16.mxu0 0
    %858 = vmatpush1.bf16.msra.mxu0 0
    %859 = vmatprep.subr.bf16.mxu0 0
    %860 = vmatpush1.bf16.msra.mxu0 0
    %861 = vmatprep.subr.bf16.mxu0 0
    %862 = vmatpush1.bf16.msra.mxu0 0
    %863 = vmatprep.subr.bf16.mxu0 0
    %864 = vmatpush1.bf16.msra.mxu0 0
    %865 = vmatprep.subr.bf16.mxu0 0
    %866 = vmatpush1.bf16.msra.mxu0 0
    %867 = vmatprep.subr.bf16.mxu0 0
    %868 = vmatpush1.bf16.msra.mxu0 0
    %869 = vmatprep.subr.bf16.mxu0 0
    %870 = vmatpush1.bf16.msra.mxu0 0
    %871 = vmatprep.subr.bf16.mxu0 0
    %872 = vmatpush1.bf16.msra.mxu0 0
    %873 = vmatprep.subr.bf16.mxu0 0
    %874 = vmatpush1.bf16.msra.mxu0 0
    %875 = vmatprep.subr.bf16.mxu0 0
    %876 = vmatpush1.bf16.msra.mxu0 0
    %877 = vmatprep.mubr.bf16.mxu0 0
    %878 = vmatmul.mubr.bf16.gmra.mrb[0].mxu0 %v840
    %v879 = vpop.f32.mrb[0].mxu0
    %v880 = vadd.f32 0.0, %v879
    %v881 = vpop.f32.mrb[0].mxu0
    %v882 = vpop.f32.mrb[0].mxu0
    %v883 = vadd.f32 0.0, %v882
    %v884 = vpop.f32.mrb[0].mxu0
    %885 = vmatprep.mubr.bf16.mxu0 0
    %886 = vmatmul.mubr.bf16.gmra.mrb[0].mxu0 %v843
    %v887 = vpop.f32.mrb[0].mxu0
    %v888 = vadd.f32 0.0, %v887
    %v889 = vpop.f32.mrb[0].mxu0
    %v890 = vpop.f32.mrb[0].mxu0
    %v891 = vadd.f32 0.0, %v890
    %v892 = vpop.f32.mrb[0].mxu0
    %893 = vdwg.mxu0
    %v894 = vadd.f32 %v820, %v880
    %v895 = vadd.f32 %v821, %v883
    %v896 = vadd.f32 %v822, %v888
    %v897 = vadd.f32 %v823, %v891
    %s898 = scalar_lea.vmem %s1, 64
    %v899 = vld [vmem:[%s898] sm:$0xf]
    %v900 = vld [vmem:[%s898 + $0x4] sm:$0xf]
    %v901 = vld [vmem:[%s898 + $0x8] sm:$0xf]
    %v902 = vld [vmem:[%s898 + $0xc] sm:$0xf]
    %v907 = vunpack.c.l.b16 %v899
    %v908 = vunpack.c.l.b16 %v900
    %v909 = vunpack.c.l.b16 %v901
    %v910 = vunpack.c.l.b16 %v902
    %v911 = vpack.c.b16 %v908, %v907
    %v912 = vpack.c.b16 %v910, %v909
    %v914 = vsel %vm616, %v911, 0
    %v917 = vsel %vm616, %v912, 0
    %919 = vmatprep.subr.bf16.mxu0 0
    %920 = vmatpush1.bf16.msra.mxu0 %v596
    %921 = vmatprep.subr.bf16.mxu0 0
    %922 = vmatpush1.bf16.msra.mxu0 %v601
    %923 = vmatprep.subr.bf16.mxu0 0
    %924 = vmatpush1.bf16.msra.mxu0 0
    %925 = vmatprep.subr.bf16.mxu0 0
    %926 = vmatpush1.bf16.msra.mxu0 0
    %927 = vmatprep.subr.bf16.mxu0 0
    %928 = vmatpush1.bf16.msra.mxu0 0
    %929 = vmatprep.subr.bf16.mxu0 0
    %930 = vmatpush1.bf16.msra.mxu0 0
    %931 = vmatprep.subr.bf16.mxu0 0
    %932 = vmatpush1.bf16.msra.mxu0 0
    %933 = vmatprep.subr.bf16.mxu0 0
    %934 = vmatpush1.bf16.msra.mxu0 0
    %935 = vmatprep.subr.bf16.mxu0 0
    %936 = vmatpush1.bf16.msra.mxu0 0
    %937 = vmatprep.subr.bf16.mxu0 0
    %938 = vmatpush1.bf16.msra.mxu0 0
    %939 = vmatprep.subr.bf16.mxu0 0
    %940 = vmatpush1.bf16.msra.mxu0 0
    %941 = vmatprep.subr.bf16.mxu0 0
    %942 = vmatpush1.bf16.msra.mxu0 0
    %943 = vmatprep.subr.bf16.mxu0 0
    %944 = vmatpush1.bf16.msra.mxu0 0
    %945 = vmatprep.subr.bf16.mxu0 0
    %946 = vmatpush1.bf16.msra.mxu0 0
    %947 = vmatprep.subr.bf16.mxu0 0
    %948 = vmatpush1.bf16.msra.mxu0 0
    %949 = vmatprep.subr.bf16.mxu0 0
    %950 = vmatpush1.bf16.msra.mxu0 0
    %951 = vmatprep.mubr.bf16.mxu0 0
    %952 = vmatmul.mubr.bf16.gmra.mrb[0].mxu0 %v914
    %v953 = vpop.f32.mrb[0].mxu0
    %v954 = vadd.f32 0.0, %v953
    %v955 = vpop.f32.mrb[0].mxu0
    %v956 = vpop.f32.mrb[0].mxu0
    %v957 = vadd.f32 0.0, %v956
    %v958 = vpop.f32.mrb[0].mxu0
    %959 = vmatprep.mubr.bf16.mxu0 0
    %960 = vmatmul.mubr.bf16.gmra.mrb[0].mxu0 %v917
    %v961 = vpop.f32.mrb[0].mxu0
    %v962 = vadd.f32 0.0, %v961
    %v963 = vpop.f32.mrb[0].mxu0
    %v964 = vpop.f32.mrb[0].mxu0
    %v965 = vadd.f32 0.0, %v964
    %v966 = vpop.f32.mrb[0].mxu0
    %967 = vdwg.mxu0
    %v968 = vadd.f32 %v894, %v954
    %v969 = vadd.f32 %v895, %v957
    %v970 = vadd.f32 %v896, %v962
    %v971 = vadd.f32 %v897, %v965
    %v972 = vmax.f32 %v968, 0.0
    %v973 = vmax.f32 %v969, 0.0
    %v974 = vmax.f32 %v970, 0.0
    %v975 = vmax.f32 %v971, 0.0
    %v976 = vpack.c.bf16 %v973, %v972
    %v977 = vpack.c.bf16 %v975, %v974
    %v978 = vld [vmem:[%s5] sm:$0xff]
    %v979 = vld [vmem:[%s5 + $0x8] sm:$0xff]
    %v980 = vld [vmem:[%s5 + $0x10] sm:$0xf]
    %v981 = vld [vmem:[%s5 + $0x14] sm:$0xff]
    %v982 = vld [vmem:[%s5 + $0x1c] sm:$0xff]
    %v983 = vld [vmem:[%s5 + $0x24] sm:$0xf]
    %v984 = vld [vmem:[%s5 + $0x28] sm:$0xff]
    %v985 = vld [vmem:[%s5 + $0x30] sm:$0xff]
    %v986 = vld [vmem:[%s5 + $0x38] sm:$0xf]
    %v987 = vld [vmem:[%s5 + $0x3c] sm:$0xff]
    %v988 = vld [vmem:[%s5 + $0x44] sm:$0xff]
    %v989 = vld [vmem:[%s5 + $0x4c] sm:$0xf]
    %v990 = vld [vmem:[%s5 + $0x50] sm:$0xff]
    %v991 = vld [vmem:[%s5 + $0x58] sm:$0xff]
    %v992 = vld [vmem:[%s5 + $0x60] sm:$0xf]
    %v993 = vld [vmem:[%s5 + $0x64] sm:$0xff]
    %v994 = vld [vmem:[%s5 + $0x6c] sm:$0xff]
    %v995 = vld [vmem:[%s5 + $0x74] sm:$0xf]
    %v996 = vld [vmem:[%s5 + $0x78] sm:$0xff]
    %v997 = vld [vmem:[%s5 + $0x80] sm:$0xff]
    %v998 = vld [vmem:[%s5 + $0x88] sm:$0xf]
    %v999 = vld [vmem:[%s5 + $0x8c] sm:$0xff]
    %v1000 = vld [vmem:[%s5 + $0x94] sm:$0xff]
    %v1001 = vld [vmem:[%s5 + $0x9c] sm:$0xf]
    %v1002 = vld [vmem:[%s5 + $0xa0] sm:$0xff]
    %v1003 = vld [vmem:[%s5 + $0xa8] sm:$0xff]
    %v1004 = vld [vmem:[%s5 + $0xb0] sm:$0xf]
    %v1005 = vld [vmem:[%s5 + $0xb4] sm:$0xff]
    %v1006 = vld [vmem:[%s5 + $0xbc] sm:$0xff]
    %v1007 = vld [vmem:[%s5 + $0xc4] sm:$0xf]
    %v1008 = vld [vmem:[%s5 + $0xc8] sm:$0xff]
    %v1009 = vld [vmem:[%s5 + $0xd0] sm:$0xff]
    %v1010 = vld [vmem:[%s5 + $0xd8] sm:$0xf]
    %v1011 = vld [vmem:[%s5 + $0xdc] sm:$0xff]
    %v1012 = vld [vmem:[%s5 + $0xe4] sm:$0xff]
    %v1013 = vld [vmem:[%s5 + $0xec] sm:$0xf]
    %v1014 = vld [vmem:[%s5 + $0xf0] sm:$0xff]
    %v1015 = vld [vmem:[%s5 + $0xf8] sm:$0xff]
    %v1016 = vld [vmem:[%s5 + $0x100] sm:$0xf]
    %v1017 = vld [vmem:[%s5 + $0x104] sm:$0xff]
    %v1018 = vld [vmem:[%s5 + $0x10c] sm:$0xff]
    %v1019 = vld [vmem:[%s5 + $0x114] sm:$0xf]
    %v1020 = vld [vmem:[%s5 + $0x118] sm:$0xff]
    %v1021 = vld [vmem:[%s5 + $0x120] sm:$0xff]
    %v1022 = vld [vmem:[%s5 + $0x128] sm:$0xf]
    %v1023 = vld [vmem:[%s5 + $0x12c] sm:$0xff]
    %v1024 = vld [vmem:[%s5 + $0x134] sm:$0xff]
    %v1025 = vld [vmem:[%s5 + $0x13c] sm:$0xf]
    %v1026 = vld [vmem:[%s6] sm:$0xf]
    %v1027 = vld [vmem:[%s6 + $0x4] sm:$0xf]
    %v1028 = vld [vmem:[%s6 + $0x8] sm:$0xf]
    %v1029 = vld [vmem:[%s6 + $0xc] sm:$0xf]
    %v1030 = vld [vmem:[%s6 + $0x10] sm:$0xf]
    %v1031 = vld [vmem:[%s6 + $0x14] sm:$0xf]
    %v1032 = vld [vmem:[%s6 + $0x18] sm:$0xf]
    %v1033 = vld [vmem:[%s6 + $0x1c] sm:$0xf]
    %v1034 = vld [vmem:[%s6 + $0x20] sm:$0xf]
    %v1035 = vld [vmem:[%s6 + $0x24] sm:$0xf]
    %v1036 = vld [vmem:[%s6 + $0x28] sm:$0xf]
    %v1037 = vld [vmem:[%s6 + $0x2c] sm:$0xf]
    %v1038 = vld [vmem:[%s6 + $0x30] sm:$0xf]
    %v1039 = vld [vmem:[%s6 + $0x34] sm:$0xf]
    %v1040 = vld [vmem:[%s6 + $0x38] sm:$0xf]
    %v1041 = vld [vmem:[%s6 + $0x3c] sm:$0xf]
    %v1042 = vld [vmem:[%s7] sm:$0x1]
    %v1091 = vunpack.c.l.b16 %v978
    %v1092 = vunpack.c.h.b16 %v978
    %v1093 = vunpack.c.l.b16 %v979
    %v1094 = vunpack.c.h.b16 %v979
    %v1095 = vunpack.c.l.b16 %v980
    %v1096 = vunpack.c.l.b16 %v981
    %v1097 = vunpack.c.h.b16 %v981
    %v1098 = vunpack.c.l.b16 %v982
    %v1099 = vunpack.c.h.b16 %v982
    %v1100 = vunpack.c.l.b16 %v983
    %v1101 = vunpack.c.l.b16 %v984
    %v1102 = vunpack.c.h.b16 %v984
    %v1103 = vunpack.c.l.b16 %v985
    %v1104 = vunpack.c.h.b16 %v985
    %v1105 = vunpack.c.l.b16 %v986
    %v1106 = vunpack.c.l.b16 %v987
    %v1107 = vunpack.c.h.b16 %v987
    %v1108 = vunpack.c.l.b16 %v988
    %v1109 = vunpack.c.h.b16 %v988
    %v1110 = vunpack.c.l.b16 %v989
    %v1111 = vunpack.c.l.b16 %v990
    %v1112 = vunpack.c.h.b16 %v990
    %v1113 = vunpack.c.l.b16 %v991
    %v1114 = vunpack.c.h.b16 %v991
    %v1115 = vunpack.c.l.b16 %v992
    %v1116 = vunpack.c.l.b16 %v993
    %v1117 = vunpack.c.h.b16 %v993
    %v1118 = vunpack.c.l.b16 %v994
    %v1119 = vunpack.c.h.b16 %v994
    %v1120 = vunpack.c.l.b16 %v995
    %v1121 = vunpack.c.l.b16 %v996
    %v1122 = vunpack.c.h.b16 %v996
    %v1123 = vunpack.c.l.b16 %v997
    %v1124 = vunpack.c.h.b16 %v997
    %v1125 = vunpack.c.l.b16 %v998
    %v1126 = vunpack.c.l.b16 %v999
    %v1127 = vunpack.c.h.b16 %v999
    %v1128 = vunpack.c.l.b16 %v1000
    %v1129 = vunpack.c.h.b16 %v1000
    %v1130 = vunpack.c.l.b16 %v1001
    %v1131 = vunpack.c.l.b16 %v1002
    %v1132 = vunpack.c.h.b16 %v1002
    %v1133 = vunpack.c.l.b16 %v1003
    %v1134 = vunpack.c.h.b16 %v1003
    %v1135 = vunpack.c.l.b16 %v1004
    %v1136 = vunpack.c.l.b16 %v1005
    %v1137 = vunpack.c.h.b16 %v1005
    %v1138 = vunpack.c.l.b16 %v1006
    %v1139 = vunpack.c.h.b16 %v1006
    %v1140 = vunpack.c.l.b16 %v1007
    %v1141 = vunpack.c.l.b16 %v1008
    %v1142 = vunpack.c.h.b16 %v1008
    %v1143 = vunpack.c.l.b16 %v1009
    %v1144 = vunpack.c.h.b16 %v1009
    %v1145 = vunpack.c.l.b16 %v1010
    %v1146 = vunpack.c.l.b16 %v1011
    %v1147 = vunpack.c.h.b16 %v1011
    %v1148 = vunpack.c.l.b16 %v1012
    %v1149 = vunpack.c.h.b16 %v1012
    %v1150 = vunpack.c.l.b16 %v1013
    %v1151 = vunpack.c.l.b16 %v1014
    %v1152 = vunpack.c.h.b16 %v1014
    %v1153 = vunpack.c.l.b16 %v1015
    %v1154 = vunpack.c.h.b16 %v1015
    %v1155 = vunpack.c.l.b16 %v1016
    %v1156 = vunpack.c.l.b16 %v1017
    %v1157 = vunpack.c.h.b16 %v1017
    %v1158 = vunpack.c.l.b16 %v1018
    %v1159 = vunpack.c.h.b16 %v1018
    %v1160 = vunpack.c.l.b16 %v1019
    %v1161 = vunpack.c.l.b16 %v1020
    %v1162 = vunpack.c.h.b16 %v1020
    %v1163 = vunpack.c.l.b16 %v1021
    %v1164 = vunpack.c.h.b16 %v1021
    %v1165 = vunpack.c.l.b16 %v1022
    %v1166 = vunpack.c.l.b16 %v1023
    %v1167 = vunpack.c.h.b16 %v1023
    %v1168 = vunpack.c.l.b16 %v1024
    %v1169 = vunpack.c.h.b16 %v1024
    %v1170 = vunpack.c.l.b16 %v1025
    %v1171 = vpack.c.b16 %v1096, %v1091
    %v1172 = vpack.c.b16 %v1097, %v1092
    %v1173 = vpack.c.b16 %v1098, %v1093
    %v1174 = vpack.c.b16 %v1099, %v1094
    %v1175 = vpack.c.b16 %v1100, %v1095
    %v1176 = vpack.c.b16 %v1106, %v1101
    %v1177 = vpack.c.b16 %v1107, %v1102
    %v1178 = vpack.c.b16 %v1108, %v1103
    %v1179 = vpack.c.b16 %v1109, %v1104
    %v1180 = vpack.c.b16 %v1110, %v1105
    %v1181 = vpack.c.b16 %v1116, %v1111
    %v1182 = vpack.c.b16 %v1117, %v1112
    %v1183 = vpack.c.b16 %v1118, %v1113
    %v1184 = vpack.c.b16 %v1119, %v1114
    %v1185 = vpack.c.b16 %v1120, %v1115
    %v1186 = vpack.c.b16 %v1126, %v1121
    %v1187 = vpack.c.b16 %v1127, %v1122
    %v1188 = vpack.c.b16 %v1128, %v1123
    %v1189 = vpack.c.b16 %v1129, %v1124
    %v1190 = vpack.c.b16 %v1130, %v1125
    %v1191 = vpack.c.b16 %v1136, %v1131
    %v1192 = vpack.c.b16 %v1137, %v1132
    %v1193 = vpack.c.b16 %v1138, %v1133
    %v1194 = vpack.c.b16 %v1139, %v1134
    %v1195 = vpack.c.b16 %v1140, %v1135
    %v1196 = vpack.c.b16 %v1146, %v1141
    %v1197 = vpack.c.b16 %v1147, %v1142
    %v1198 = vpack.c.b16 %v1148, %v1143
    %v1199 = vpack.c.b16 %v1149, %v1144
    %v1200 = vpack.c.b16 %v1150, %v1145
    %v1201 = vpack.c.b16 %v1156, %v1151
    %v1202 = vpack.c.b16 %v1157, %v1152
    %v1203 = vpack.c.b16 %v1158, %v1153
    %v1204 = vpack.c.b16 %v1159, %v1154
    %v1205 = vpack.c.b16 %v1160, %v1155
    %v1206 = vpack.c.b16 %v1166, %v1161
    %v1207 = vpack.c.b16 %v1167, %v1162
    %v1208 = vpack.c.b16 %v1168, %v1163
    %v1209 = vpack.c.b16 %v1169, %v1164
    %v1210 = vpack.c.b16 %v1170, %v1165
    %1251 = vmatprep.subr.bf16.mxu0 %v1172
    %1252 = vmatpush1.bf16.msra.mxu0 %v1171
    %1253 = vmatprep.subr.bf16.mxu0 %v1177
    %1254 = vmatpush1.bf16.msra.mxu0 %v1176
    %1255 = vmatprep.subr.bf16.mxu0 %v1182
    %1256 = vmatpush1.bf16.msra.mxu0 %v1181
    %1257 = vmatprep.subr.bf16.mxu0 %v1187
    %1258 = vmatpush1.bf16.msra.mxu0 %v1186
    %1259 = vmatprep.subr.bf16.mxu0 %v1192
    %1260 = vmatpush1.bf16.msra.mxu0 %v1191
    %1261 = vmatprep.subr.bf16.mxu0 %v1197
    %1262 = vmatpush1.bf16.msra.mxu0 %v1196
    %1263 = vmatprep.subr.bf16.mxu0 %v1202
    %1264 = vmatpush1.bf16.msra.mxu0 %v1201
    %1265 = vmatprep.subr.bf16.mxu0 %v1207
    %1266 = vmatpush1.bf16.msra.mxu0 %v1206
    %1267 = vmatprep.subr.bf16.mxu0 0
    %1268 = vmatpush1.bf16.msra.mxu0 0
    %1269 = vmatprep.subr.bf16.mxu0 0
    %1270 = vmatpush1.bf16.msra.mxu0 0
    %1271 = vmatprep.subr.bf16.mxu0 0
    %1272 = vmatpush1.bf16.msra.mxu0 0
    %1273 = vmatprep.subr.bf16.mxu0 0
    %1274 = vmatpush1.bf16.msra.mxu0 0
    %1275 = vmatprep.subr.bf16.mxu0 0
    %1276 = vmatpush1.bf16.msra.mxu0 0
    %1277 = vmatprep.subr.bf16.mxu0 0
    %1278 = vmatpush1.bf16.msra.mxu0 0
    %1279 = vmatprep.subr.bf16.mxu0 0
    %1280 = vmatpush1.bf16.msra.mxu0 0
    %1281 = vmatprep.subr.bf16.mxu0 0
    %1282 = vmatpush1.bf16.msra.mxu0 0
    %1283 = vmatprep.mubr.bf16.mxu0 0
    %1284 = vmatmul.mubr.bf16.gmra.mrb[0].mxu0 %v976
    %v1285 = vpop.f32.mrb[0].mxu0
    %v1286 = vadd.f32 0.0, %v1285
    %v1287 = vpop.f32.mrb[0].mxu0
    %v1288 = vadd.f32 0.0, %v1287
    %v1289 = vpop.f32.mrb[0].mxu0
    %v1290 = vadd.f32 0.0, %v1289
    %v1291 = vpop.f32.mrb[0].mxu0
    %v1292 = vadd.f32 0.0, %v1291
    %1293 = vmatprep.mubr.bf16.mxu0 0
    %1294 = vmatmul.mubr.bf16.gmra.mrb[0].mxu0 %v977
    %v1295 = vpop.f32.mrb[0].mxu0
    %v1296 = vadd.f32 0.0, %v1295
    %v1297 = vpop.f32.mrb[0].mxu0
    %v1298 = vadd.f32 0.0, %v1297
    %v1299 = vpop.f32.mrb[0].mxu0
    %v1300 = vadd.f32 0.0, %v1299
    %v1301 = vpop.f32.mrb[0].mxu0
    %v1302 = vadd.f32 0.0, %v1301
    %1303 = vdwg.mxu0
    %1304 = vmatprep.subr.bf16.mxu0 %v1174
    %1305 = vmatpush1.bf16.msra.mxu0 %v1173
    %1306 = vmatprep.subr.bf16.mxu0 %v1179
    %1307 = vmatpush1.bf16.msra.mxu0 %v1178
    %1308 = vmatprep.subr.bf16.mxu0 %v1184
    %1309 = vmatpush1.bf16.msra.mxu0 %v1183
    %1310 = vmatprep.subr.bf16.mxu0 %v1189
    %1311 = vmatpush1.bf16.msra.mxu0 %v1188
    %1312 = vmatprep.subr.bf16.mxu0 %v1194
    %1313 = vmatpush1.bf16.msra.mxu0 %v1193
    %1314 = vmatprep.subr.bf16.mxu0 %v1199
    %1315 = vmatpush1.bf16.msra.mxu0 %v1198
    %1316 = vmatprep.subr.bf16.mxu0 %v1204
    %1317 = vmatpush1.bf16.msra.mxu0 %v1203
    %1318 = vmatprep.subr.bf16.mxu0 %v1209
    %1319 = vmatpush1.bf16.msra.mxu0 %v1208
    %1320 = vmatprep.subr.bf16.mxu0 0
    %1321 = vmatpush1.bf16.msra.mxu0 0
    %1322 = vmatprep.subr.bf16.mxu0 0
    %1323 = vmatpush1.bf16.msra.mxu0 0
    %1324 = vmatprep.subr.bf16.mxu0 0
    %1325 = vmatpush1.bf16.msra.mxu0 0
    %1326 = vmatprep.subr.bf16.mxu0 0
    %1327 = vmatpush1.bf16.msra.mxu0 0
    %1328 = vmatprep.subr.bf16.mxu0 0
    %1329 = vmatpush1.bf16.msra.mxu0 0
    %1330 = vmatprep.subr.bf16.mxu0 0
    %1331 = vmatpush1.bf16.msra.mxu0 0
    %1332 = vmatprep.subr.bf16.mxu0 0
    %1333 = vmatpush1.bf16.msra.mxu0 0
    %1334 = vmatprep.subr.bf16.mxu0 0
    %1335 = vmatpush1.bf16.msra.mxu0 0
    %1336 = vmatprep.mubr.bf16.mxu0 0
    %1337 = vmatmul.mubr.bf16.gmra.mrb[0].mxu0 %v976
    %v1338 = vpop.f32.mrb[0].mxu0
    %v1339 = vadd.f32 0.0, %v1338
    %v1340 = vpop.f32.mrb[0].mxu0
    %v1341 = vadd.f32 0.0, %v1340
    %v1342 = vpop.f32.mrb[0].mxu0
    %v1343 = vadd.f32 0.0, %v1342
    %v1344 = vpop.f32.mrb[0].mxu0
    %v1345 = vadd.f32 0.0, %v1344
    %1346 = vmatprep.mubr.bf16.mxu0 0
    %1347 = vmatmul.mubr.bf16.gmra.mrb[0].mxu0 %v977
    %v1348 = vpop.f32.mrb[0].mxu0
    %v1349 = vadd.f32 0.0, %v1348
    %v1350 = vpop.f32.mrb[0].mxu0
    %v1351 = vadd.f32 0.0, %v1350
    %v1352 = vpop.f32.mrb[0].mxu0
    %v1353 = vadd.f32 0.0, %v1352
    %v1354 = vpop.f32.mrb[0].mxu0
    %v1355 = vadd.f32 0.0, %v1354
    %1356 = vdwg.mxu0
    %1357 = vmatprep.subr.bf16.mxu0 0
    %1358 = vmatpush1.bf16.msra.mxu0 %v1175
    %1359 = vmatprep.subr.bf16.mxu0 0
    %1360 = vmatpush1.bf16.msra.mxu0 %v1180
    %1361 = vmatprep.subr.bf16.mxu0 0
    %1362 = vmatpush1.bf16.msra.mxu0 %v1185
    %1363 = vmatprep.subr.bf16.mxu0 0
    %1364 = vmatpush1.bf16.msra.mxu0 %v1190
    %1365 = vmatprep.subr.bf16.mxu0 0
    %1366 = vmatpush1.bf16.msra.mxu0 %v1195
    %1367 = vmatprep.subr.bf16.mxu0 0
    %1368 = vmatpush1.bf16.msra.mxu0 %v1200
    %1369 = vmatprep.subr.bf16.mxu0 0
    %1370 = vmatpush1.bf16.msra.mxu0 %v1205
    %1371 = vmatprep.subr.bf16.mxu0 0
    %1372 = vmatpush1.bf16.msra.mxu0 %v1210
    %1373 = vmatprep.subr.bf16.mxu0 0
    %1374 = vmatpush1.bf16.msra.mxu0 0
    %1375 = vmatprep.subr.bf16.mxu0 0
    %1376 = vmatpush1.bf16.msra.mxu0 0
    %1377 = vmatprep.subr.bf16.mxu0 0
    %1378 = vmatpush1.bf16.msra.mxu0 0
    %1379 = vmatprep.subr.bf16.mxu0 0
    %1380 = vmatpush1.bf16.msra.mxu0 0
    %1381 = vmatprep.subr.bf16.mxu0 0
    %1382 = vmatpush1.bf16.msra.mxu0 0
    %1383 = vmatprep.subr.bf16.mxu0 0
    %1384 = vmatpush1.bf16.msra.mxu0 0
    %1385 = vmatprep.subr.bf16.mxu0 0
    %1386 = vmatpush1.bf16.msra.mxu0 0
    %1387 = vmatprep.subr.bf16.mxu0 0
    %1388 = vmatpush1.bf16.msra.mxu0 0
    %1389 = vmatprep.mubr.bf16.mxu0 0
    %1390 = vmatmul.mubr.bf16.gmra.mrb[0].mxu0 %v976
    %v1391 = vpop.f32.mrb[0].mxu0
    %v1392 = vadd.f32 0.0, %v1391
    %v1393 = vpop.f32.mrb[0].mxu0
    %v1394 = vpop.f32.mrb[0].mxu0
    %v1395 = vadd.f32 0.0, %v1394
    %v1396 = vpop.f32.mrb[0].mxu0
    %1397 = vmatprep.mubr.bf16.mxu0 0
    %1398 = vmatmul.mubr.bf16.gmra.mrb[0].mxu0 %v977
    %v1399 = vpop.f32.mrb[0].mxu0
    %v1400 = vadd.f32 0.0, %v1399
    %v1401 = vpop.f32.mrb[0].mxu0
    %v1402 = vpop.f32.mrb[0].mxu0
    %v1403 = vadd.f32 0.0, %v1402
    %v1404 = vpop.f32.mrb[0].mxu0
    %1405 = vdwg.mxu0
    %v1407 = vlaneseq
    %v1408 = vshrl.u32 %v1407, 7
    %v1409 = vsub.s32 0, %v1408
    %v1410 = vrot.slane %v1042, %v1409
    %v1428 = vunpack.c.l.b16 %v1026
    %v1429 = vunpack.c.l.b16 %v1027
    %v1430 = vunpack.c.l.b16 %v1028
    %v1431 = vunpack.c.l.b16 %v1029
    %v1432 = vunpack.c.l.b16 %v1030
    %v1433 = vunpack.c.l.b16 %v1031
    %v1434 = vunpack.c.l.b16 %v1032
    %v1435 = vunpack.c.l.b16 %v1033
    %v1436 = vunpack.c.l.b16 %v1034
    %v1437 = vunpack.c.l.b16 %v1035
    %v1438 = vunpack.c.l.b16 %v1036
    %v1439 = vunpack.c.l.b16 %v1037
    %v1440 = vunpack.c.l.b16 %v1038
    %v1441 = vunpack.c.l.b16 %v1039
    %v1442 = vunpack.c.l.b16 %v1040
    %v1443 = vunpack.c.l.b16 %v1041
    %v1444 = vpack.c.b16 %v1429, %v1428
    %v1445 = vpack.c.b16 %v1431, %v1430
    %v1446 = vpack.c.b16 %v1433, %v1432
    %v1447 = vpack.c.b16 %v1435, %v1434
    %v1448 = vpack.c.b16 %v1437, %v1436
    %v1449 = vpack.c.b16 %v1439, %v1438
    %v1450 = vpack.c.b16 %v1441, %v1440
    %v1451 = vpack.c.b16 %v1443, %v1442
    %1460 = vmatprep.subr.bf16.mxu0 0
    %1461 = vmatpush1.bf16.msra.mxu0 %v1444
    %1462 = vmatprep.subr.bf16.mxu0 0
    %1463 = vmatpush1.bf16.msra.mxu0 %v1445
    %1464 = vmatprep.subr.bf16.mxu0 0
    %1465 = vmatpush1.bf16.msra.mxu0 %v1446
    %1466 = vmatprep.subr.bf16.mxu0 0
    %1467 = vmatpush1.bf16.msra.mxu0 %v1447
    %1468 = vmatprep.subr.bf16.mxu0 0
    %1469 = vmatpush1.bf16.msra.mxu0 %v1448
    %1470 = vmatprep.subr.bf16.mxu0 0
    %1471 = vmatpush1.bf16.msra.mxu0 %v1449
    %1472 = vmatprep.subr.bf16.mxu0 0
    %1473 = vmatpush1.bf16.msra.mxu0 %v1450
    %1474 = vmatprep.subr.bf16.mxu0 0
    %1475 = vmatpush1.bf16.msra.mxu0 %v1451
    %1476 = vmatprep.subr.bf16.mxu0 0
    %1477 = vmatpush1.bf16.msra.mxu0 0
    %1478 = vmatprep.subr.bf16.mxu0 0
    %1479 = vmatpush1.bf16.msra.mxu0 0
    %1480 = vmatprep.subr.bf16.mxu0 0
    %1481 = vmatpush1.bf16.msra.mxu0 0
    %1482 = vmatprep.subr.bf16.mxu0 0
    %1483 = vmatpush1.bf16.msra.mxu0 0
    %1484 = vmatprep.subr.bf16.mxu0 0
    %1485 = vmatpush1.bf16.msra.mxu0 0
    %1486 = vmatprep.subr.bf16.mxu0 0
    %1487 = vmatpush1.bf16.msra.mxu0 0
    %1488 = vmatprep.subr.bf16.mxu0 0
    %1489 = vmatpush1.bf16.msra.mxu0 0
    %1490 = vmatprep.subr.bf16.mxu0 0
    %1491 = vmatpush1.bf16.msra.mxu0 0
    %1492 = vmatprep.mubr.bf16.mxu0 0
    %1493 = vmatmul.mubr.bf16.gmra.mrb[0].mxu0 %v976
    %v1494 = vpop.f32.mrb[0].mxu0
    %v1495 = vadd.f32 %v1410, %v1494
    %v1496 = vpop.f32.mrb[0].mxu0
    %v1497 = vpop.f32.mrb[0].mxu0
    %v1498 = vadd.f32 %v1410, %v1497
    %v1499 = vpop.f32.mrb[0].mxu0
    %1500 = vmatprep.mubr.bf16.mxu0 0
    %1501 = vmatmul.mubr.bf16.gmra.mrb[0].mxu0 %v977
    %v1502 = vpop.f32.mrb[0].mxu0
    %v1503 = vadd.f32 %v1410, %v1502
    %v1504 = vpop.f32.mrb[0].mxu0
    %v1505 = vpop.f32.mrb[0].mxu0
    %v1506 = vadd.f32 %v1410, %v1505
    %v1507 = vpop.f32.mrb[0].mxu0
    %1508 = vdwg.mxu0
    %v1509 = vpack.c.bf16 %v1290, %v1286
    %v1510 = vpack.c.bf16 %v1292, %v1288
    %v1511 = vpack.c.bf16 %v1343, %v1339
    %v1512 = vpack.c.bf16 %v1345, %v1341
    %v1513 = vpack.c.bf16 %v1395, %v1392
    %v1514 = vpack.c.bf16 %v1300, %v1296
    %v1515 = vpack.c.bf16 %v1302, %v1298
    %v1516 = vpack.c.bf16 %v1353, %v1349
    %v1517 = vpack.c.bf16 %v1355, %v1351
    %v1518 = vpack.c.bf16 %v1403, %v1400
    %1519 = vmatprep.subr.bf16.mxu0 0
    %1520 = vmatpush1.bf16.msra.mxu0 %v1509
    %1521 = vmatprep.subr.bf16.mxu0 0
    %1522 = vmatpush1.bf16.msra.mxu0 %v1514
    %1523 = vmatprep.subr.bf16.mxu0 0
    %1524 = vmatpush1.bf16.msra.mxu0 0
    %1525 = vmatprep.subr.bf16.mxu0 0
    %1526 = vmatpush1.bf16.msra.mxu0 0
    %1527 = vmatprep.subr.bf16.mxu0 0
    %1528 = vmatpush1.bf16.msra.mxu0 0
    %1529 = vmatprep.subr.bf16.mxu0 0
    %1530 = vmatpush1.bf16.msra.mxu0 0
    %1531 = vmatprep.subr.bf16.mxu0 0
    %1532 = vmatpush1.bf16.msra.mxu0 0
    %1533 = vmatprep.subr.bf16.mxu0 0
    %1534 = vmatpush1.bf16.msra.mxu0 0
    %1535 = vmatprep.subr.bf16.mxu0 0
    %1536 = vmatpush1.bf16.msra.mxu0 0
    %1537 = vmatprep.subr.bf16.mxu0 0
    %1538 = vmatpush1.bf16.msra.mxu0 0
    %1539 = vmatprep.subr.bf16.mxu0 0
    %1540 = vmatpush1.bf16.msra.mxu0 0
    %1541 = vmatprep.subr.bf16.mxu0 0
    %1542 = vmatpush1.bf16.msra.mxu0 0
    %1543 = vmatprep.subr.bf16.mxu0 0
    %1544 = vmatpush1.bf16.msra.mxu0 0
    %1545 = vmatprep.subr.bf16.mxu0 0
    %1546 = vmatpush1.bf16.msra.mxu0 0
    %1547 = vmatprep.subr.bf16.mxu0 0
    %1548 = vmatpush1.bf16.msra.mxu0 0
    %1549 = vmatprep.subr.bf16.mxu0 0
    %1550 = vmatpush1.bf16.msra.mxu0 0
    %1551 = vmatprep.mubr.bf16.mxu0 0
    %1552 = vmatmul.mubr.bf16.gmra.mrb[0].mxu0 %v618
    %v1553 = vpop.f32.mrb[0].mxu0
    %v1554 = vadd.f32 0.0, %v1553
    %v1555 = vpop.f32.mrb[0].mxu0
    %v1556 = vpop.f32.mrb[0].mxu0
    %v1557 = vadd.f32 0.0, %v1556
    %v1558 = vpop.f32.mrb[0].mxu0
    %1559 = vmatprep.mubr.bf16.mxu0 0
    %1560 = vmatmul.mubr.bf16.gmra.mrb[0].mxu0 %v621
    %v1561 = vpop.f32.mrb[0].mxu0
    %v1562 = vadd.f32 0.0, %v1561
    %v1563 = vpop.f32.mrb[0].mxu0
    %v1564 = vpop.f32.mrb[0].mxu0
    %v1565 = vadd.f32 0.0, %v1564
    %v1566 = vpop.f32.mrb[0].mxu0
    %1567 = vdwg.mxu0
    %v1568 = vadd.f32 %v1495, %v1554
    %v1569 = vadd.f32 %v1498, %v1557
    %v1570 = vadd.f32 %v1503, %v1562
    %v1571 = vadd.f32 %v1506, %v1565
    %1572 = vmatprep.subr.bf16.mxu0 0
    %1573 = vmatpush1.bf16.msra.mxu0 %v1510
    %1574 = vmatprep.subr.bf16.mxu0 0
    %1575 = vmatpush1.bf16.msra.mxu0 %v1515
    %1576 = vmatprep.subr.bf16.mxu0 0
    %1577 = vmatpush1.bf16.msra.mxu0 0
    %1578 = vmatprep.subr.bf16.mxu0 0
    %1579 = vmatpush1.bf16.msra.mxu0 0
    %1580 = vmatprep.subr.bf16.mxu0 0
    %1581 = vmatpush1.bf16.msra.mxu0 0
    %1582 = vmatprep.subr.bf16.mxu0 0
    %1583 = vmatpush1.bf16.msra.mxu0 0
    %1584 = vmatprep.subr.bf16.mxu0 0
    %1585 = vmatpush1.bf16.msra.mxu0 0
    %1586 = vmatprep.subr.bf16.mxu0 0
    %1587 = vmatpush1.bf16.msra.mxu0 0
    %1588 = vmatprep.subr.bf16.mxu0 0
    %1589 = vmatpush1.bf16.msra.mxu0 0
    %1590 = vmatprep.subr.bf16.mxu0 0
    %1591 = vmatpush1.bf16.msra.mxu0 0
    %1592 = vmatprep.subr.bf16.mxu0 0
    %1593 = vmatpush1.bf16.msra.mxu0 0
    %1594 = vmatprep.subr.bf16.mxu0 0
    %1595 = vmatpush1.bf16.msra.mxu0 0
    %1596 = vmatprep.subr.bf16.mxu0 0
    %1597 = vmatpush1.bf16.msra.mxu0 0
    %1598 = vmatprep.subr.bf16.mxu0 0
    %1599 = vmatpush1.bf16.msra.mxu0 0
    %1600 = vmatprep.subr.bf16.mxu0 0
    %1601 = vmatpush1.bf16.msra.mxu0 0
    %1602 = vmatprep.subr.bf16.mxu0 0
    %1603 = vmatpush1.bf16.msra.mxu0 0
    %1604 = vmatprep.mubr.bf16.mxu0 0
    %1605 = vmatmul.mubr.bf16.gmra.mrb[0].mxu0 %v692
    %v1606 = vpop.f32.mrb[0].mxu0
    %v1607 = vadd.f32 0.0, %v1606
    %v1608 = vpop.f32.mrb[0].mxu0
    %v1609 = vpop.f32.mrb[0].mxu0
    %v1610 = vadd.f32 0.0, %v1609
    %v1611 = vpop.f32.mrb[0].mxu0
    %1612 = vmatprep.mubr.bf16.mxu0 0
    %1613 = vmatmul.mubr.bf16.gmra.mrb[0].mxu0 %v695
    %v1614 = vpop.f32.mrb[0].mxu0
    %v1615 = vadd.f32 0.0, %v1614
    %v1616 = vpop.f32.mrb[0].mxu0
    %v1617 = vpop.f32.mrb[0].mxu0
    %v1618 = vadd.f32 0.0, %v1617
    %v1619 = vpop.f32.mrb[0].mxu0
    %1620 = vdwg.mxu0
    %v1621 = vadd.f32 %v1568, %v1607
    %v1622 = vadd.f32 %v1569, %v1610
    %v1623 = vadd.f32 %v1570, %v1615
    %v1624 = vadd.f32 %v1571, %v1618
    %1625 = vmatprep.subr.bf16.mxu0 0
    %1626 = vmatpush1.bf16.msra.mxu0 %v1511
    %1627 = vmatprep.subr.bf16.mxu0 0
    %1628 = vmatpush1.bf16.msra.mxu0 %v1516
    %1629 = vmatprep.subr.bf16.mxu0 0
    %1630 = vmatpush1.bf16.msra.mxu0 0
    %1631 = vmatprep.subr.bf16.mxu0 0
    %1632 = vmatpush1.bf16.msra.mxu0 0
    %1633 = vmatprep.subr.bf16.mxu0 0
    %1634 = vmatpush1.bf16.msra.mxu0 0
    %1635 = vmatprep.subr.bf16.mxu0 0
    %1636 = vmatpush1.bf16.msra.mxu0 0
    %1637 = vmatprep.subr.bf16.mxu0 0
    %1638 = vmatpush1.bf16.msra.mxu0 0
    %1639 = vmatprep.subr.bf16.mxu0 0
    %1640 = vmatpush1.bf16.msra.mxu0 0
    %1641 = vmatprep.subr.bf16.mxu0 0
    %1642 = vmatpush1.bf16.msra.mxu0 0
    %1643 = vmatprep.subr.bf16.mxu0 0
    %1644 = vmatpush1.bf16.msra.mxu0 0
    %1645 = vmatprep.subr.bf16.mxu0 0
    %1646 = vmatpush1.bf16.msra.mxu0 0
    %1647 = vmatprep.subr.bf16.mxu0 0
    %1648 = vmatpush1.bf16.msra.mxu0 0
    %1649 = vmatprep.subr.bf16.mxu0 0
    %1650 = vmatpush1.bf16.msra.mxu0 0
    %1651 = vmatprep.subr.bf16.mxu0 0
    %1652 = vmatpush1.bf16.msra.mxu0 0
    %1653 = vmatprep.subr.bf16.mxu0 0
    %1654 = vmatpush1.bf16.msra.mxu0 0
    %1655 = vmatprep.subr.bf16.mxu0 0
    %1656 = vmatpush1.bf16.msra.mxu0 0
    %1657 = vmatprep.mubr.bf16.mxu0 0
    %1658 = vmatmul.mubr.bf16.gmra.mrb[0].mxu0 %v766
    %v1659 = vpop.f32.mrb[0].mxu0
    %v1660 = vadd.f32 0.0, %v1659
    %v1661 = vpop.f32.mrb[0].mxu0
    %v1662 = vpop.f32.mrb[0].mxu0
    %v1663 = vadd.f32 0.0, %v1662
    %v1664 = vpop.f32.mrb[0].mxu0
    %1665 = vmatprep.mubr.bf16.mxu0 0
    %1666 = vmatmul.mubr.bf16.gmra.mrb[0].mxu0 %v769
    %v1667 = vpop.f32.mrb[0].mxu0
    %v1668 = vadd.f32 0.0, %v1667
    %v1669 = vpop.f32.mrb[0].mxu0
    %v1670 = vpop.f32.mrb[0].mxu0
    %v1671 = vadd.f32 0.0, %v1670
    %v1672 = vpop.f32.mrb[0].mxu0
    %1673 = vdwg.mxu0
    %v1674 = vadd.f32 %v1621, %v1660
    %v1675 = vadd.f32 %v1622, %v1663
    %v1676 = vadd.f32 %v1623, %v1668
    %v1677 = vadd.f32 %v1624, %v1671
    %1678 = vmatprep.subr.bf16.mxu0 0
    %1679 = vmatpush1.bf16.msra.mxu0 %v1512
    %1680 = vmatprep.subr.bf16.mxu0 0
    %1681 = vmatpush1.bf16.msra.mxu0 %v1517
    %1682 = vmatprep.subr.bf16.mxu0 0
    %1683 = vmatpush1.bf16.msra.mxu0 0
    %1684 = vmatprep.subr.bf16.mxu0 0
    %1685 = vmatpush1.bf16.msra.mxu0 0
    %1686 = vmatprep.subr.bf16.mxu0 0
    %1687 = vmatpush1.bf16.msra.mxu0 0
    %1688 = vmatprep.subr.bf16.mxu0 0
    %1689 = vmatpush1.bf16.msra.mxu0 0
    %1690 = vmatprep.subr.bf16.mxu0 0
    %1691 = vmatpush1.bf16.msra.mxu0 0
    %1692 = vmatprep.subr.bf16.mxu0 0
    %1693 = vmatpush1.bf16.msra.mxu0 0
    %1694 = vmatprep.subr.bf16.mxu0 0
    %1695 = vmatpush1.bf16.msra.mxu0 0
    %1696 = vmatprep.subr.bf16.mxu0 0
    %1697 = vmatpush1.bf16.msra.mxu0 0
    %1698 = vmatprep.subr.bf16.mxu0 0
    %1699 = vmatpush1.bf16.msra.mxu0 0
    %1700 = vmatprep.subr.bf16.mxu0 0
    %1701 = vmatpush1.bf16.msra.mxu0 0
    %1702 = vmatprep.subr.bf16.mxu0 0
    %1703 = vmatpush1.bf16.msra.mxu0 0
    %1704 = vmatprep.subr.bf16.mxu0 0
    %1705 = vmatpush1.bf16.msra.mxu0 0
    %1706 = vmatprep.subr.bf16.mxu0 0
    %1707 = vmatpush1.bf16.msra.mxu0 0
    %1708 = vmatprep.subr.bf16.mxu0 0
    %1709 = vmatpush1.bf16.msra.mxu0 0
    %1710 = vmatprep.mubr.bf16.mxu0 0
    %1711 = vmatmul.mubr.bf16.gmra.mrb[0].mxu0 %v840
    %v1712 = vpop.f32.mrb[0].mxu0
    %v1713 = vadd.f32 0.0, %v1712
    %v1714 = vpop.f32.mrb[0].mxu0
    %v1715 = vpop.f32.mrb[0].mxu0
    %v1716 = vadd.f32 0.0, %v1715
    %v1717 = vpop.f32.mrb[0].mxu0
    %1718 = vmatprep.mubr.bf16.mxu0 0
    %1719 = vmatmul.mubr.bf16.gmra.mrb[0].mxu0 %v843
    %v1720 = vpop.f32.mrb[0].mxu0
    %v1721 = vadd.f32 0.0, %v1720
    %v1722 = vpop.f32.mrb[0].mxu0
    %v1723 = vpop.f32.mrb[0].mxu0
    %v1724 = vadd.f32 0.0, %v1723
    %v1725 = vpop.f32.mrb[0].mxu0
    %1726 = vdwg.mxu0
    %v1727 = vadd.f32 %v1674, %v1713
    %v1728 = vadd.f32 %v1675, %v1716
    %v1729 = vadd.f32 %v1676, %v1721
    %v1730 = vadd.f32 %v1677, %v1724
    %1731 = vmatprep.subr.bf16.mxu0 0
    %1732 = vmatpush1.bf16.msra.mxu0 %v1513
    %1733 = vmatprep.subr.bf16.mxu0 0
    %1734 = vmatpush1.bf16.msra.mxu0 %v1518
    %1735 = vmatprep.subr.bf16.mxu0 0
    %1736 = vmatpush1.bf16.msra.mxu0 0
    %1737 = vmatprep.subr.bf16.mxu0 0
    %1738 = vmatpush1.bf16.msra.mxu0 0
    %1739 = vmatprep.subr.bf16.mxu0 0
    %1740 = vmatpush1.bf16.msra.mxu0 0
    %1741 = vmatprep.subr.bf16.mxu0 0
    %1742 = vmatpush1.bf16.msra.mxu0 0
    %1743 = vmatprep.subr.bf16.mxu0 0
    %1744 = vmatpush1.bf16.msra.mxu0 0
    %1745 = vmatprep.subr.bf16.mxu0 0
    %1746 = vmatpush1.bf16.msra.mxu0 0
    %1747 = vmatprep.subr.bf16.mxu0 0
    %1748 = vmatpush1.bf16.msra.mxu0 0
    %1749 = vmatprep.subr.bf16.mxu0 0
    %1750 = vmatpush1.bf16.msra.mxu0 0
    %1751 = vmatprep.subr.bf16.mxu0 0
    %1752 = vmatpush1.bf16.msra.mxu0 0
    %1753 = vmatprep.subr.bf16.mxu0 0
    %1754 = vmatpush1.bf16.msra.mxu0 0
    %1755 = vmatprep.subr.bf16.mxu0 0
    %1756 = vmatpush1.bf16.msra.mxu0 0
    %1757 = vmatprep.subr.bf16.mxu0 0
    %1758 = vmatpush1.bf16.msra.mxu0 0
    %1759 = vmatprep.subr.bf16.mxu0 0
    %1760 = vmatpush1.bf16.msra.mxu0 0
    %1761 = vmatprep.subr.bf16.mxu0 0
    %1762 = vmatpush1.bf16.msra.mxu0 0
    %1763 = vmatprep.mubr.bf16.mxu0 0
    %1764 = vmatmul.mubr.bf16.gmra.mrb[0].mxu0 %v914
    %v1765 = vpop.f32.mrb[0].mxu0
    %v1766 = vadd.f32 0.0, %v1765
    %v1767 = vpop.f32.mrb[0].mxu0
    %v1768 = vpop.f32.mrb[0].mxu0
    %v1769 = vadd.f32 0.0, %v1768
    %v1770 = vpop.f32.mrb[0].mxu0
    %1771 = vmatprep.mubr.bf16.mxu0 0
    %1772 = vmatmul.mubr.bf16.gmra.mrb[0].mxu0 %v917
    %v1773 = vpop.f32.mrb[0].mxu0
    %v1774 = vadd.f32 0.0, %v1773
    %v1775 = vpop.f32.mrb[0].mxu0
    %v1776 = vpop.f32.mrb[0].mxu0
    %v1777 = vadd.f32 0.0, %v1776
    %v1778 = vpop.f32.mrb[0].mxu0
    %1779 = vdwg.mxu0
    %v1780 = vadd.f32 %v1727, %v1766
    %v1781 = vadd.f32 %v1728, %v1769
    %v1782 = vadd.f32 %v1729, %v1774
    %v1783 = vadd.f32 %v1730, %v1777
    %v1784 = vmax.f32 %v1780, 0.0
    %v1785 = vmax.f32 %v1781, 0.0
    %v1786 = vmax.f32 %v1782, 0.0
    %v1787 = vmax.f32 %v1783, 0.0
    %v1788 = vpack.c.bf16 %v1785, %v1784
    %v1789 = vpack.c.bf16 %v1787, %v1786
    %v1790 = vld [vmem:[%s8] sm:$0xf]
    %v1791 = vld [vmem:[%s8 + $0x4] sm:$0xf]
    %v1792 = vld [vmem:[%s8 + $0x8] sm:$0xf]
    %v1793 = vld [vmem:[%s8 + $0xc] sm:$0xf]
    %v1794 = vld [vmem:[%s8 + $0x10] sm:$0xf]
    %v1795 = vld [vmem:[%s8 + $0x14] sm:$0xf]
    %v1796 = vld [vmem:[%s8 + $0x18] sm:$0xf]
    %v1797 = vld [vmem:[%s8 + $0x1c] sm:$0xf]
    %v1798 = vld [vmem:[%s8 + $0x20] sm:$0xf]
    %v1799 = vld [vmem:[%s8 + $0x24] sm:$0xf]
    %v1800 = vld [vmem:[%s8 + $0x28] sm:$0xf]
    %v1801 = vld [vmem:[%s8 + $0x2c] sm:$0xf]
    %v1802 = vld [vmem:[%s8 + $0x30] sm:$0xf]
    %v1803 = vld [vmem:[%s8 + $0x34] sm:$0xf]
    %v1804 = vld [vmem:[%s8 + $0x38] sm:$0xf]
    %v1805 = vld [vmem:[%s8 + $0x3c] sm:$0xf]
    %v1806 = vld [vmem:[%s9] sm:$0x1]
    %v1808 = vlaneseq
    %v1809 = vshrl.u32 %v1808, 7
    %v1810 = vsub.s32 0, %v1809
    %v1811 = vrot.slane %v1806, %v1810
    %v1829 = vunpack.c.l.b16 %v1790
    %v1830 = vunpack.c.l.b16 %v1791
    %v1831 = vunpack.c.l.b16 %v1792
    %v1832 = vunpack.c.l.b16 %v1793
    %v1833 = vunpack.c.l.b16 %v1794
    %v1834 = vunpack.c.l.b16 %v1795
    %v1835 = vunpack.c.l.b16 %v1796
    %v1836 = vunpack.c.l.b16 %v1797
    %v1837 = vunpack.c.l.b16 %v1798
    %v1838 = vunpack.c.l.b16 %v1799
    %v1839 = vunpack.c.l.b16 %v1800
    %v1840 = vunpack.c.l.b16 %v1801
    %v1841 = vunpack.c.l.b16 %v1802
    %v1842 = vunpack.c.l.b16 %v1803
    %v1843 = vunpack.c.l.b16 %v1804
    %v1844 = vunpack.c.l.b16 %v1805
    %v1845 = vpack.c.b16 %v1830, %v1829
    %v1846 = vpack.c.b16 %v1832, %v1831
    %v1847 = vpack.c.b16 %v1834, %v1833
    %v1848 = vpack.c.b16 %v1836, %v1835
    %v1849 = vpack.c.b16 %v1838, %v1837
    %v1850 = vpack.c.b16 %v1840, %v1839
    %v1851 = vpack.c.b16 %v1842, %v1841
    %v1852 = vpack.c.b16 %v1844, %v1843
    %1861 = vmatprep.subr.bf16.mxu0 0
    %1862 = vmatpush1.bf16.msra.mxu0 %v1845
    %1863 = vmatprep.subr.bf16.mxu0 0
    %1864 = vmatpush1.bf16.msra.mxu0 %v1846
    %1865 = vmatprep.subr.bf16.mxu0 0
    %1866 = vmatpush1.bf16.msra.mxu0 %v1847
    %1867 = vmatprep.subr.bf16.mxu0 0
    %1868 = vmatpush1.bf16.msra.mxu0 %v1848
    %1869 = vmatprep.subr.bf16.mxu0 0
    %1870 = vmatpush1.bf16.msra.mxu0 %v1849
    %1871 = vmatprep.subr.bf16.mxu0 0
    %1872 = vmatpush1.bf16.msra.mxu0 %v1850
    %1873 = vmatprep.subr.bf16.mxu0 0
    %1874 = vmatpush1.bf16.msra.mxu0 %v1851
    %1875 = vmatprep.subr.bf16.mxu0 0
    %1876 = vmatpush1.bf16.msra.mxu0 %v1852
    %1877 = vmatprep.subr.bf16.mxu0 0
    %1878 = vmatpush1.bf16.msra.mxu0 0
    %1879 = vmatprep.subr.bf16.mxu0 0
    %1880 = vmatpush1.bf16.msra.mxu0 0
    %1881 = vmatprep.subr.bf16.mxu0 0
    %1882 = vmatpush1.bf16.msra.mxu0 0
    %1883 = vmatprep.subr.bf16.mxu0 0
    %1884 = vmatpush1.bf16.msra.mxu0 0
    %1885 = vmatprep.subr.bf16.mxu0 0
    %1886 = vmatpush1.bf16.msra.mxu0 0
    %1887 = vmatprep.subr.bf16.mxu0 0
    %1888 = vmatpush1.bf16.msra.mxu0 0
    %1889 = vmatprep.subr.bf16.mxu0 0
    %1890 = vmatpush1.bf16.msra.mxu0 0
    %1891 = vmatprep.subr.bf16.mxu0 0
    %1892 = vmatpush1.bf16.msra.mxu0 0
    %1893 = vmatprep.mubr.bf16.mxu0 0
    %1894 = vmatmul.mubr.bf16.gmra.mrb[0].mxu0 %v1788
    %v1895 = vpop.f32.mrb[0].mxu0
    %v1896 = vadd.f32 %v1811, %v1895
    %v1897 = vpop.f32.mrb[0].mxu0
    %v1898 = vpop.f32.mrb[0].mxu0
    %v1899 = vadd.f32 %v1811, %v1898
    %v1900 = vpop.f32.mrb[0].mxu0
    %1901 = vmatprep.mubr.bf16.mxu0 0
    %1902 = vmatmul.mubr.bf16.gmra.mrb[0].mxu0 %v1789
    %v1903 = vpop.f32.mrb[0].mxu0
    %v1904 = vadd.f32 %v1811, %v1903
    %v1905 = vpop.f32.mrb[0].mxu0
    %v1906 = vpop.f32.mrb[0].mxu0
    %v1907 = vadd.f32 %v1811, %v1906
    %v1908 = vpop.f32.mrb[0].mxu0
    %1909 = vdwg.mxu0
    %v1910 = vmax.f32 %v1896, 0.0
    %v1911 = vmax.f32 %v1899, 0.0
    %v1912 = vmax.f32 %v1904, 0.0
    %v1913 = vmax.f32 %v1907, 0.0
    %1914 = vst [vmem:[#allocation2] sm:$0xff] %v1910
    %1915 = vst [vmem:[#allocation2 + $0x8] sm:$0xff] %v1911
    %1916 = vst [vmem:[#allocation2 + $0x10] sm:$0xff] %v1912
    %1917 = vst [vmem:[#allocation2 + $0x18] sm:$0xff] %v1913
    %v1918 = vpack.c.bf16 %v1911, %v1910
    %v1919 = vpack.c.bf16 %v1913, %v1912
    %v1920 = vld [vmem:[%s10] sm:$0xf]
    %v1921 = vld [vmem:[%s10 + $0x4] sm:$0xf]
    %v1922 = vld [vmem:[%s10 + $0x8] sm:$0xf]
    %v1923 = vld [vmem:[%s10 + $0xc] sm:$0xf]
    %v1924 = vld [vmem:[%s10 + $0x10] sm:$0xf]
    %v1925 = vld [vmem:[%s10 + $0x14] sm:$0xf]
    %v1926 = vld [vmem:[%s10 + $0x18] sm:$0xf]
    %v1927 = vld [vmem:[%s10 + $0x1c] sm:$0xf]
    %v1928 = vld [vmem:[%s10 + $0x20] sm:$0xf]
    %v1929 = vld [vmem:[%s10 + $0x24] sm:$0xf]
    %v1930 = vld [vmem:[%s10 + $0x28] sm:$0xf]
    %v1931 = vld [vmem:[%s10 + $0x2c] sm:$0xf]
    %v1932 = vld [vmem:[%s10 + $0x30] sm:$0xf]
    %v1933 = vld [vmem:[%s10 + $0x34] sm:$0xf]
    %v1934 = vld [vmem:[%s10 + $0x38] sm:$0xf]
    %v1935 = vld [vmem:[%s10 + $0x3c] sm:$0xf]
    %v1936 = vld [vmem:[%s11] sm:$0x1]
    %v1938 = vlaneseq
    %v1939 = vshrl.u32 %v1938, 7
    %v1940 = vsub.s32 0, %v1939
    %v1941 = vrot.slane %v1936, %v1940
    %v1959 = vunpack.c.l.b16 %v1920
    %v1960 = vunpack.c.l.b16 %v1921
    %v1961 = vunpack.c.l.b16 %v1922
    %v1962 = vunpack.c.l.b16 %v1923
    %v1963 = vunpack.c.l.b16 %v1924
    %v1964 = vunpack.c.l.b16 %v1925
    %v1965 = vunpack.c.l.b16 %v1926
    %v1966 = vunpack.c.l.b16 %v1927
    %v1967 = vunpack.c.l.b16 %v1928
    %v1968 = vunpack.c.l.b16 %v1929
    %v1969 = vunpack.c.l.b16 %v1930
    %v1970 = vunpack.c.l.b16 %v1931
    %v1971 = vunpack.c.l.b16 %v1932
    %v1972 = vunpack.c.l.b16 %v1933
    %v1973 = vunpack.c.l.b16 %v1934
    %v1974 = vunpack.c.l.b16 %v1935
    %v1975 = vpack.c.b16 %v1960, %v1959
    %v1976 = vpack.c.b16 %v1962, %v1961
    %v1977 = vpack.c.b16 %v1964, %v1963
    %v1978 = vpack.c.b16 %v1966, %v1965
    %v1979 = vpack.c.b16 %v1968, %v1967
    %v1980 = vpack.c.b16 %v1970, %v1969
    %v1981 = vpack.c.b16 %v1972, %v1971
    %v1982 = vpack.c.b16 %v1974, %v1973
    %1991 = vmatprep.subr.bf16.mxu0 0
    %1992 = vmatpush1.bf16.msra.mxu0 %v1975
    %1993 = vmatprep.subr.bf16.mxu0 0
    %1994 = vmatpush1.bf16.msra.mxu0 %v1976
    %1995 = vmatprep.subr.bf16.mxu0 0
    %1996 = vmatpush1.bf16.msra.mxu0 %v1977
    %1997 = vmatprep.subr.bf16.mxu0 0
    %1998 = vmatpush1.bf16.msra.mxu0 %v1978
    %1999 = vmatprep.subr.bf16.mxu0 0
    %2000 = vmatpush1.bf16.msra.mxu0 %v1979
    %2001 = vmatprep.subr.bf16.mxu0 0
    %2002 = vmatpush1.bf16.msra.mxu0 %v1980
    %2003 = vmatprep.subr.bf16.mxu0 0
    %2004 = vmatpush1.bf16.msra.mxu0 %v1981
    %2005 = vmatprep.subr.bf16.mxu0 0
    %2006 = vmatpush1.bf16.msra.mxu0 %v1982
    %2007 = vmatprep.subr.bf16.mxu0 0
    %2008 = vmatpush1.bf16.msra.mxu0 0
    %2009 = vmatprep.subr.bf16.mxu0 0
    %2010 = vmatpush1.bf16.msra.mxu0 0
    %2011 = vmatprep.subr.bf16.mxu0 0
    %2012 = vmatpush1.bf16.msra.mxu0 0
    %2013 = vmatprep.subr.bf16.mxu0 0
    %2014 = vmatpush1.bf16.msra.mxu0 0
    %2015 = vmatprep.subr.bf16.mxu0 0
    %2016 = vmatpush1.bf16.msra.mxu0 0
    %2017 = vmatprep.subr.bf16.mxu0 0
    %2018 = vmatpush1.bf16.msra.mxu0 0
    %2019 = vmatprep.subr.bf16.mxu0 0
    %2020 = vmatpush1.bf16.msra.mxu0 0
    %2021 = vmatprep.subr.bf16.mxu0 0
    %2022 = vmatpush1.bf16.msra.mxu0 0
    %2023 = vmatprep.mubr.bf16.mxu0 0
    %2024 = vmatmul.mubr.bf16.gmra.mrb[0].mxu0 %v1918
    %v2025 = vpop.f32.mrb[0].mxu0
    %v2026 = vadd.f32 %v1941, %v2025
    %v2027 = vpop.f32.mrb[0].mxu0
    %v2028 = vpop.f32.mrb[0].mxu0
    %v2029 = vadd.f32 %v1941, %v2028
    %v2030 = vpop.f32.mrb[0].mxu0
    %2031 = vmatprep.mubr.bf16.mxu0 0
    %2032 = vmatmul.mubr.bf16.gmra.mrb[0].mxu0 %v1919
    %v2033 = vpop.f32.mrb[0].mxu0
    %v2034 = vadd.f32 %v1941, %v2033
    %v2035 = vpop.f32.mrb[0].mxu0
    %v2036 = vpop.f32.mrb[0].mxu0
    %v2037 = vadd.f32 %v1941, %v2036
    %v2038 = vpop.f32.mrb[0].mxu0
    %2039 = vdwg.mxu0
    %v2040 = vlaneseq
    %v2041 = vand.u32 %v2040, 127
    %vm2042 = vcmp.lt.s32.totalorder %v2041, 2
    %v2043 = vsel %vm2042, %v2026, -1e+30
    %v2044 = vsel %vm2042, %v2029, -1e+30
    %v2045 = vsel %vm2042, %v2034, -1e+30
    %v2046 = vsel %vm2042, %v2037, -1e+30
    %2047 = vmax.xlane.f32.xlu0 %v2043
    %v2048 = vpop.xlane.xlu0 %2047
    %2049 = vmax.xlane.f32.xlu0 %v2044
    %v2050 = vpop.xlane.xlu0 %2049
    %2051 = vmax.xlane.f32.xlu0 %v2045
    %v2052 = vpop.xlane.xlu0 %2051
    %2053 = vmax.xlane.f32.xlu0 %v2046
    %v2054 = vpop.xlane.xlu0 %2053
    %v2055 = vsub.f32 %v2043, %v2048
    %v2056 = vsub.f32 %v2044, %v2050
    %v2057 = vsub.f32 %v2045, %v2052
    %v2058 = vsub.f32 %v2046, %v2054
    %v2059 = vmul.f32 %v2055, 1.442695
    %v2060 = vpow.pop %v2059
    %v2061 = vmul.f32 %v2056, 1.442695
    %v2062 = vpow.pop %v2061
    %v2063 = vmul.f32 %v2057, 1.442695
    %v2064 = vpow.pop %v2063
    %v2065 = vmul.f32 %v2058, 1.442695
    %v2066 = vpow.pop %v2065
    %2067 = vadd.xlane.f32.xlu0 %v2060
    %v2068 = vpop.xlane.xlu0 %2067
    %2069 = vadd.xlane.f32.xlu0 %v2062
    %v2070 = vpop.xlane.xlu0 %2069
    %2071 = vadd.xlane.f32.xlu0 %v2064
    %v2072 = vpop.xlane.xlu0 %2071
    %2073 = vadd.xlane.f32.xlu0 %v2066
    %v2074 = vpop.xlane.xlu0 %2073
    %v2075 = vlog2.pop %v2068
    %v2076 = vmul.f32 %v2075, 0.6931472
    %v2077 = vlog2.pop %v2070
    %v2078 = vmul.f32 %v2077, 0.6931472
    %v2079 = vlog2.pop %v2072
    %v2080 = vmul.f32 %v2079, 0.6931472
    %v2081 = vlog2.pop %v2074
    %v2082 = vmul.f32 %v2081, 0.6931472
    %v2083 = vsub.f32 %v2055, %v2076
    %v2084 = vsub.f32 %v2056, %v2078
    %v2085 = vsub.f32 %v2057, %v2080
    %v2086 = vsub.f32 %v2058, %v2082
    %2087 = vst [vmem:[%s12] sm:$0xff] %v2083
    %2088 = vst [vmem:[%s12 + $0x8] sm:$0xff] %v2084
    %2089 = vst [vmem:[%s12 + $0x10] sm:$0xff] %v2085
    %2090 = vst [vmem:[%s12 + $0x18] sm:$0xff] %v2086
    // Predicated region
    $region50: #{net_forward.1} parent=1 // pred_check
      _
    $region51: #{net_forward.1} parent=1 // pred_check_branch
      %2092 = sbr.rel (0) target = $region53
    $region52: #{net_forward.1} parent=1 // pred_region
      _
    $region53: #{net_forward.1} parent=1 // pred_fallthru
      _
    // Predicated region
    $region54: #{net_forward.1} parent=1 // pred_check
      _
    $region55: #{net_forward.1} parent=1 // pred_check_branch
      %2094 = sbr.rel (0) target = $region57
    $region56: #{net_forward.1} parent=1 // pred_region
      %s2096 = ssub.s32 512, 512
      %2097 = vsyncadd [#allocation3], %s2096
      %s2098 = sshll.u32 [#allocation2], 4
      %s2099 = int_to_ptr.vmem [resolvable:$true] %s2098
      %2104 = dma.vmem_to_hbm [thread:$0]  %s2099, 512, %s13, [#allocation3], 128, 128, 8
    $region57: #{net_forward.1} parent=1 // pred_fallthru
      _
    // Predicated region
    $region58: #{net_forward.1} parent=1 // pred_check
      _
    $region59: #{net_forward.1} parent=1 // pred_check_branch
      %2106 = sbr.rel (0) target = $region61
    $region60: #{net_forward.1} parent=1 // pred_region
      _
    $region61: #{net_forward.1} parent=1 // pred_fallthru
      _
    // Predicated region
    $region62: #{net_forward.1} parent=1 // pred_check
      _
    $region63: #{net_forward.1} parent=1 // pred_check_branch
      %2108 = sbr.rel (0) target = $region65
    $region64: #{net_forward.1} parent=1 // pred_region
      %2109 = dma.done [#allocation3], 512
    $region65: #{net_forward.1} parent=1 // pred_fallthru
      _
    %2110 = vsyncpa [#allocation3], 1

</llo_original>
